<compile_context>
chip_gen: v6e
topology: v6e:2x2x1
jax: 0.10.0
libtpu: 0.0.40
codegen_flags: <defaults>
</compile_context>

<pallas_src>
import jax
import jax.numpy as jnp
from jax.experimental import pallas as pl
from jax.experimental.pallas import tpu as pltpu

V_TH = 1.0       # IF neuron threshold
BN_EPS = 1e-5
TM_DEFAULT = 512  # M-tile target (rows of the im2col matmul)


def _round_up(x, m):
    return ((x + m - 1) // m) * m


def _vmem_limit_bytes():
    cap = 128 * 1024 * 1024
    try:
        cap = pltpu.get_tpu_info().vmem_capacity_bytes
    except Exception:
        pass
    # leave headroom: half of physical, capped at 64 MiB (v5e/v6e), 32 MiB on v7x
    return max(16 * 1024 * 1024, min(cap // 2, 64 * 1024 * 1024))


# ---------------------------------------------------------------------------
# Pallas kernels
# ---------------------------------------------------------------------------
def make_convblock_kernel(static, residual):
    """Fused conv-matmul + BN affine + multi-step IF (+ optional SEW residual add).

    Grid: (num_m_tiles, T), T innermost.  Refs per grid step:
      patches_ref : (1, tm, K)    bf16 im2col patches for this (m, t)
      w_ref       : (K, Cout)     bf16 flattened conv weight
      scale_ref   : (1, Cout)     f32 folded BN scale
      bias_ref    : (1, Cout)     f32 folded BN bias
      [res_ref]   : (1, tm, Cout) bf16 identity spikes (fused SEW ADD)
      out_ref     : (1, tm, Cout) bf16 output spikes
      v_ref       : (tm, Cout)    f32 membrane potential (persists over t)
      [drive_ref] : (tm, Cout)    f32 cached static drive (conv1 only)
    """

    def kernel(*args):
        if residual:
            patches_ref, w_ref, scale_ref, bias_ref, res_ref = args[:5]
            out_ref = args[5]
            scratch = args[6:]
        else:
            patches_ref, w_ref, scale_ref, bias_ref = args[:4]
            out_ref = args[4]
            scratch = args[5:]
        if static:
            v_ref, drive_ref = scratch
        else:
            (v_ref,) = scratch

        t = pl.program_id(1)

        @pl.when(t == 0)
        def _():
            v_ref[...] = jnp.zeros_like(v_ref)

        if static:
            # Static drive: conv+BN computed once per M-tile, reused for all t.
            @pl.when(t == 0)
            def _():
                y0 = jnp.dot(patches_ref[0], w_ref[...],
                             preferred_element_type=jnp.float32)
                drive_ref[...] = y0 * scale_ref[...] + bias_ref[...]
            y = drive_ref[...]
        else:
            y = jnp.dot(patches_ref[0], w_ref[...],
                        preferred_element_type=jnp.float32)
            y = y * scale_ref[...] + bias_ref[...]        # folded BatchNorm

        v = v_ref[...] + y                                # IF: integrate
        spike = (v >= V_TH).astype(jnp.float32)           # fire
        v_ref[...] = v * (1.0 - spike)                    # hard reset to 0

        if residual:                                      # SEW "ADD" residual
            out_ref[0] = (spike + res_ref[0].astype(jnp.float32)).astype(out_ref.dtype)
        else:
            out_ref[0] = spike.astype(out_ref.dtype)

    return kernel


def fc_kernel(x_ref, w_ref, b_ref, o_ref):
    o_ref[...] = jnp.dot(x_ref[...], w_ref[...],
                         preferred_element_type=jnp.float32) + b_ref[...]


# ---------------------------------------------------------------------------
# Pallas wrappers
# ---------------------------------------------------------------------------
def run_convblock(patches, w2d, scale, bias, T, static, residual=None,
                  tm_target=TM_DEFAULT):
    """patches: (Tp, M, K) bf16 (Tp==1 when static, else Tp==T).
       residual: optional (T, M, Cout) bf16.  Returns (T, M, Cout) bf16 spikes."""
    Tp, M, K = patches.shape
    Cout = w2d.shape[1]

    tm = min(tm_target, _round_up(M, 16))
    Mp = _round_up(M, tm)
    if Mp != M:
        patches = jnp.pad(patches, ((0, 0), (0, Mp - M), (0, 0)))
        if residual is not None:
            residual = jnp.pad(residual, ((0, 0), (0, Mp - M), (0, 0)))
    num_m = Mp // tm

    patch_idx = (lambda m, t: (0, m, 0)) if static else (lambda m, t: (t, m, 0))
    in_specs = [
        pl.BlockSpec((1, tm, K), patch_idx),
        pl.BlockSpec((K, Cout), lambda m, t: (0, 0)),
        pl.BlockSpec((1, Cout), lambda m, t: (0, 0)),
        pl.BlockSpec((1, Cout), lambda m, t: (0, 0)),
    ]
    args = [patches, w2d, scale, bias]
    if residual is not None:
        in_specs.append(pl.BlockSpec((1, tm, Cout), lambda m, t: (t, m, 0)))
        args.append(residual)

    scratch = [pltpu.VMEM((tm, Cout), jnp.float32)]          # membrane potential
    if static:
        scratch.append(pltpu.VMEM((tm, Cout), jnp.float32))  # cached static drive

    out = pl.pallas_call(
        make_convblock_kernel(static, residual is not None),
        out_shape=jax.ShapeDtypeStruct((T, Mp, Cout), jnp.bfloat16),
        grid_spec=pltpu.PrefetchScalarGridSpec(
            num_scalar_prefetch=0,
            grid=(num_m, T),                      # T innermost: membrane carries over t
            in_specs=in_specs,
            out_specs=pl.BlockSpec((1, tm, Cout), lambda m, t: (t, m, 0)),
            scratch_shapes=scratch,
        ),
        compiler_params=pltpu.CompilerParams(
            dimension_semantics=("parallel", "arbitrary"),   # M across cores, T recurrent
            vmem_limit_bytes=_vmem_limit_bytes(),
        ),
    )(*args)
    return out[:, :M]


def im2col(x, kh, kw, stride, pad):
    """x: (B, H, W, C) -> (B, Ho, Wo, kh*kw*C) with (kh, kw, C) patch ordering."""
    # TODO(synk): replace HBM-materialized im2col with in-kernel tap accumulation
    # (direct conv) to cut the duplicated patch traffic.
    B, H, W, C = x.shape
    Ho = (H + 2 * pad - kh) // stride + 1
    Wo = (W + 2 * pad - kw) // stride + 1
    xp = jnp.pad(x, ((0, 0), (pad, pad), (pad, pad), (0, 0)))
    cols = []
    for i in range(kh):
        for j in range(kw):
            cols.append(xp[:, i:i + stride * Ho:stride, j:j + stride * Wo:stride, :])
    return jnp.concatenate(cols, axis=-1), Ho, Wo


def apply_convblock(x, p, stride, pad, T, static=False, residual=None):
    """ConvBlock = conv(no bias) + folded BN + multi-step IF (+ fused SEW ADD).

    x: (T, N, H, W, Cin) bf16 spikes, or (N, H, W, Cin) static image if static=True.
    residual: optional (T, N, Ho, Wo, Cout) spikes to add to the output spikes.
    Returns spikes (T, N, Ho, Wo, Cout) in bf16.
    """
    w = p['w']                                   # (Cout, Cin, kh, kw) (PyTorch layout)
    bn = p['bn']
    Cout, Cin, kh, kw = w.shape
    scale = (bn['gamma'] / jnp.sqrt(bn['var'] + BN_EPS)).astype(jnp.float32)
    bias = (bn['beta'] - bn['mean'] * scale).astype(jnp.float32)

    xs = x[None] if static else x                # (Tp, N, H, W, Cin)
    xs = xs.astype(jnp.bfloat16)
    Tp, N, H, W, _ = xs.shape
    patches, Ho, Wo = im2col(xs.reshape(Tp * N, H, W, Cin), kh, kw, stride, pad)
    K = kh * kw * Cin
    patches = patches.reshape(Tp, N * Ho * Wo, K)
    w2d = jnp.transpose(w, (2, 3, 1, 0)).reshape(K, Cout).astype(jnp.bfloat16)

    res = None
    if residual is not None:
        res = residual.reshape(T, N * Ho * Wo, Cout).astype(jnp.bfloat16)

    out = run_convblock(patches, w2d, scale[None, :], bias[None, :], T, static, res)
    return out.reshape(T, N, Ho, Wo, Cout)


def maxpool3x3s2(x):
    """SeqToANNContainer(MaxPool2d(3, 2, 1)) on spikes (T, N, H, W, C).

    Pairwise jnp.maximum over the 9 taps in glue (pure VPU, no 9x HBM
    materialization of stacked taps).  Spikes are >= 0 so zero padding is safe.
    """
    T, N, H, W, C = x.shape
    kh = kw = 3
    stride, pad = 2, 1
    Ho = (H + 2 * pad - kh) // stride + 1
    Wo = (W + 2 * pad - kw) // stride + 1
    xp = jnp.pad(x, ((0, 0), (0, 0), (pad, pad), (pad, pad), (0, 0)))
    out = None
    for i in range(kh):
        for j in range(kw):
            tap = xp[:, :, i:i + stride * Ho:stride, j:j + stride * Wo:stride, :]
            out = tap if out is None else jnp.maximum(out, tap)
    return out


def run_fc(x, w, b):
    """x: (M, K), w: (K, Nout), b: (1, Nout) -> (M, Nout).  Output padded to a
    128-lane multiple inside the kernel, sliced afterwards."""
    M, K = x.shape
    Nout = w.shape[1]
    Np = _round_up(Nout, 128)
    Mp = _round_up(M, 8)
    xpad = jnp.pad(x, ((0, Mp - M), (0, 0))).astype(jnp.float32)
    wpad = jnp.pad(w, ((0, 0), (0, Np - Nout))).astype(jnp.float32)
    bpad = jnp.pad(b, ((0, 0), (0, Np - Nout))).astype(jnp.float32)
    out = pl.pallas_call(
        fc_kernel,
        out_shape=jax.ShapeDtypeStruct((Mp, Np), jnp.float32),
        grid_spec=pltpu.PrefetchScalarGridSpec(
            num_scalar_prefetch=0, grid=(1,),
            in_specs=[pl.BlockSpec((Mp, K), lambda i: (0, 0)),
                      pl.BlockSpec((K, Np), lambda i: (0, 0)),
                      pl.BlockSpec((1, Np), lambda i: (0, 0))],
            out_specs=pl.BlockSpec((Mp, Np), lambda i: (0, 0)),
        ),
    )(xpad, wpad, bpad)
    return out[:M, :Nout]


# ---------------------------------------------------------------------------
# Parameter initialization (deterministic, kaiming-normal fan_out like init_weight)
# ---------------------------------------------------------------------------
def kaiming_conv(key, cout, cin, kh, kw):
    fan_out = cout * kh * kw
    std = (2.0 / fan_out) ** 0.5
    return std * jax.random.normal(key, (cout, cin, kh, kw), jnp.float32)


def make_bn(c):
    return dict(gamma=jnp.ones((c,), jnp.float32),
                beta=jnp.zeros((c,), jnp.float32),
                mean=jnp.zeros((c,), jnp.float32),
                var=jnp.ones((c,), jnp.float32))


def init_params(key, layers=(1, 1, 1, 1), num_classes=10):
    keys = iter(jax.random.split(key, 128))
    params = {}
    params['conv1'] = dict(w=kaiming_conv(next(keys), 64, 3, 7, 7), bn=make_bn(64))
    inplanes = 64
    cfg = [(64, layers[0], 1), (128, layers[1], 2), (256, layers[2], 2), (512, layers[3], 2)]
    for li, (planes, nblocks, stride) in enumerate(cfg):
        blocks = []
        for bi in range(nblocks):
            s = stride if bi == 0 else 1
            blk = dict(stride=s)
            blk['conv1'] = dict(w=kaiming_conv(next(keys), planes, inplanes, 3, 3),
                                bn=make_bn(planes))
            blk['conv2'] = dict(w=kaiming_conv(next(keys), planes, planes, 3, 3),
                                bn=make_bn(planes))
            if s != 1 or inplanes != planes:          # BasicBlock.expansion == 1
                blk['downsample'] = dict(w=kaiming_conv(next(keys), planes, inplanes, 1, 1),
                                         bn=make_bn(planes))
            blocks.append(blk)
            inplanes = planes
        params[f'layer{li + 1}'] = blocks
    # fc: num_classes*10 < 512*expansion -> Linear(512, 10*num_classes) + boost
    out_features = num_classes * 10 if num_classes * 10 < 512 else num_classes
    std = (2.0 / out_features) ** 0.5
    params['fc'] = dict(w=std * jax.random.normal(next(keys), (out_features, 512), jnp.float32),
                        b=jnp.zeros((out_features,), jnp.float32))
    return params


# ---------------------------------------------------------------------------
# Forward pass (SEWResNet_ImageNet._forward_impl)
# ---------------------------------------------------------------------------
def forward(params, x, T=4, num_classes=10):
    # x: (N, 3, H, W) static image, NCHW as in PyTorch
    x = jnp.transpose(x, (0, 2, 3, 1)).astype(jnp.float32)        # -> NHWC
    s = apply_convblock(x, params['conv1'], stride=2, pad=3, T=T, static=True)
    s = maxpool3x3s2(s)
    for li in range(1, 5):
        for blk in params[f'layer{li}']:
            out1 = apply_convblock(s, blk['conv1'], stride=blk['stride'], pad=1, T=T)
            if 'downsample' in blk:
                identity = apply_convblock(s, blk['downsample'],
                                           stride=blk['stride'], pad=0, T=T)
            else:
                identity = s
            # SEW "ADD" residual fused into the second ConvBlock's epilogue
            s = apply_convblock(out1, blk['conv2'], stride=1, pad=1, T=T,
                                residual=identity)

    # adaptive avg pool (1,1) + flatten(2): (T, N, C)
    # TODO(synk): avg-pool reduction kept in JAX glue (spatial is tiny here).
    feat = jnp.mean(s.astype(jnp.float32), axis=(2, 3))
    Tn, N, C = feat.shape
    y = run_fc(feat.reshape(Tn * N, C), params['fc']['w'].T, params['fc']['b'][None, :])
    out_features = params['fc']['w'].shape[0]
    y = y.reshape(Tn, N, out_features)
    if out_features != num_classes:          # boost = AvgPool1d(10, 10)
        y = y.reshape(Tn, N, num_classes, 10).mean(-1)
    return y                                 # (T, N, num_classes)


if __name__ == "__main__":
    key = jax.random.PRNGKey(0)
    pkey, xkey = jax.random.split(key)
    params = init_params(pkey, layers=(1, 1, 1, 1), num_classes=10)
    x = jax.random.normal(xkey, (2, 3, 32, 32), jnp.float32)   # small ImageNet-style input
    out = forward(params, x, T=4, num_classes=10)
    out = jax.block_until_ready(out)
    assert out.shape == (4, 2, 10), out.shape
    assert bool(jnp.all(jnp.isfinite(out)))
    print("KERNEL_OK")
</pallas_src>

<mosaic_0001>
module attributes {stable_mosaic.version = 11 : i64} {
  func.func @kernel(%arg0: i32, %arg1: i32, %arg2: memref<1x512x147xbf16, #tpu.memory_space<vmem>>, %arg3: memref<147x64xbf16, #tpu.memory_space<vmem>>, %arg4: memref<1x64xf32, #tpu.memory_space<vmem>>, %arg5: memref<1x64xf32, #tpu.memory_space<vmem>>, %arg6: memref<1x512x64xbf16, #tpu.memory_space<vmem>>, %arg7: memref<512x64xf32, #tpu.memory_space<vmem>>, %arg8: memref<512x64xf32, #tpu.memory_space<vmem>>) attributes {dimension_semantics = [#tpu.dimension_semantics<parallel>, #tpu.dimension_semantics<arbitrary>], iteration_bounds = array<i64: 1, 4>, scalar_prefetch = 0 : i64, scratch_operands = 2 : i64, tpu.core_type = #tpu.core_type<tc>, window_params = [{transform_indices = @transform_0, window_bounds = array<i64: 1, 512, 147>}, {pipeline_mode = #tpu.pipeline_mode<synchronous>, transform_indices = @transform_1, window_bounds = array<i64: 147, 64>}, {pipeline_mode = #tpu.pipeline_mode<synchronous>, transform_indices = @transform_2, window_bounds = array<i64: 1, 64>}, {pipeline_mode = #tpu.pipeline_mode<synchronous>, transform_indices = @transform_3, window_bounds = array<i64: 1, 64>}, {transform_indices = @transform_4, window_bounds = array<i64: 1, 512, 64>}]} {
    %c0_i32 = arith.constant 0 : i32
    %0 = arith.cmpi eq, %arg1, %c0_i32 : i32
    %1 = arith.extui %0 : i1 to i32
    %c0_i32_0 = arith.constant 0 : i32
    %2 = arith.cmpi ne, %1, %c0_i32_0 : i32
    scf.if %2 {
      %cst_12 = arith.constant 0.000000e+00 : f32
      %21 = vector.broadcast %cst_12 : f32 to vector<512x64xf32>
      %c0_13 = arith.constant 0 : index
      %c0_14 = arith.constant 0 : index
      %22 = vector.load %arg7[%c0_13, %c0_14] : memref<512x64xf32, #tpu.memory_space<vmem>>, vector<512x64xf32>
      tpu.vector_store %arg7[%c0_13, %c0_14], %21 {strides = array<i32>} : memref<512x64xf32, #tpu.memory_space<vmem>>, vector<512x64xf32>,
    } else {
    }
    %c0_i32_1 = arith.constant 0 : i32
    %3 = arith.cmpi eq, %arg1, %c0_i32_1 : i32
    %4 = arith.extui %3 : i1 to i32
    %c0_i32_2 = arith.constant 0 : i32
    %5 = arith.cmpi ne, %4, %c0_i32_2 : i32
    scf.if %5 {
      %c0_12 = arith.constant 0 : index
      %c0_13 = arith.constant 0 : index
      %c0_14 = arith.constant 0 : index
      %21 = vector.load %arg2[%c0_12, %c0_13, %c0_14] : memref<1x512x147xbf16, #tpu.memory_space<vmem>>, vector<1x512x147xbf16>
      %22 = vector.shape_cast %21 : vector<1x512x147xbf16> to vector<512x147xbf16>
      %c0_15 = arith.constant 0 : index
      %c0_16 = arith.constant 0 : index
      %23 = vector.load %arg3[%c0_15, %c0_16] : memref<147x64xbf16, #tpu.memory_space<vmem>>, vector<147x64xbf16>
      %cst_17 = arith.constant dense<0.000000e+00> : vector<512x64xf32>
      %24 = tpu.matmul %22, %23, %cst_17 {dimension_numbers = #tpu.dot_dimension_numbers<[1], [0], [0], [1], [0, 0, 1, 1], [], []>} : vector<512x147xbf16>, vector<147x64xbf16>, vector<512x64xf32> -> vector<512x64xf32>
      %c0_18 = arith.constant 0 : index
      %c0_19 = arith.constant 0 : index
      %25 = vector.load %arg4[%c0_18, %c0_19] : memref<1x64xf32, #tpu.memory_space<vmem>>, vector<1x64xf32>
      %26 = vector.broadcast %25 : vector<1x64xf32> to vector<512x64xf32>
      %27 = arith.mulf %24, %26 : vector<512x64xf32>
      %c0_20 = arith.constant 0 : index
      %c0_21 = arith.constant 0 : index
      %28 = vector.load %arg5[%c0_20, %c0_21] : memref<1x64xf32, #tpu.memory_space<vmem>>, vector<1x64xf32>
      %29 = vector.broadcast %28 : vector<1x64xf32> to vector<512x64xf32>
      %30 = arith.addf %27, %29 : vector<512x64xf32>
      %c0_22 = arith.constant 0 : index
      %c0_23 = arith.constant 0 : index
      %31 = vector.load %arg8[%c0_22, %c0_23] : memref<512x64xf32, #tpu.memory_space<vmem>>, vector<512x64xf32>
      tpu.vector_store %arg8[%c0_22, %c0_23], %30 {strides = array<i32>} : memref<512x64xf32, #tpu.memory_space<vmem>>, vector<512x64xf32>,
    } else {
    }
    %c0 = arith.constant 0 : index
    %c0_3 = arith.constant 0 : index
    %6 = vector.load %arg8[%c0, %c0_3] : memref<512x64xf32, #tpu.memory_space<vmem>>, vector<512x64xf32>
    %c0_4 = arith.constant 0 : index
    %c0_5 = arith.constant 0 : index
    %7 = vector.load %arg7[%c0_4, %c0_5] : memref<512x64xf32, #tpu.memory_space<vmem>>, vector<512x64xf32>
    %8 = arith.addf %7, %6 : vector<512x64xf32>
    %cst = arith.constant 1.000000e+00 : f32
    %9 = vector.broadcast %cst : f32 to vector<512x64xf32>
    %10 = arith.cmpf oge, %8, %9 : vector<512x64xf32>
    %11 = arith.extui %10 : vector<512x64xi1> to vector<512x64xi32>
    %12 = arith.sitofp %11 : vector<512x64xi32> to vector<512x64xf32>
    %cst_6 = arith.constant 1.000000e+00 : f32
    %13 = vector.broadcast %cst_6 : f32 to vector<512x64xf32>
    %14 = arith.subf %13, %12 : vector<512x64xf32>
    %15 = arith.mulf %8, %14 : vector<512x64xf32>
    %c0_7 = arith.constant 0 : index
    %c0_8 = arith.constant 0 : index
    %16 = vector.load %arg7[%c0_7, %c0_8] : memref<512x64xf32, #tpu.memory_space<vmem>>, vector<512x64xf32>
    tpu.vector_store %arg7[%c0_7, %c0_8], %15 {strides = array<i32>} : memref<512x64xf32, #tpu.memory_space<vmem>>, vector<512x64xf32>,
    %17 = arith.truncf %12 : vector<512x64xf32> to vector<512x64xbf16>
    %c0_9 = arith.constant 0 : index
    %c0_10 = arith.constant 0 : index
    %c0_11 = arith.constant 0 : index
    %18 = vector.load %arg6[%c0_9, %c0_10, %c0_11] : memref<1x512x64xbf16, #tpu.memory_space<vmem>>, vector<1x512x64xbf16>
    %19 = vector.shape_cast %18 : vector<1x512x64xbf16> to vector<512x64xbf16>
    %20 = vector.shape_cast %17 : vector<512x64xbf16> to vector<1x512x64xbf16>
    tpu.vector_store %arg6[%c0_9, %c0_10, %c0_11], %20 {strides = array<i32>} : memref<1x512x64xbf16, #tpu.memory_space<vmem>>, vector<1x512x64xbf16>,
    return
  }
  func.func @transform_0(%arg0: i32, %arg1: i32) -> (i32, i32, i32) {
    %c0_i32 = arith.constant 0 : i32
    %c0_i32_0 = arith.constant 0 : i32
    %c0_i32_1 = arith.constant 0 : i32
    return %c0_i32, %arg0, %c0_i32_0 : i32, i32, i32
  }
  func.func @transform_1(%arg0: i32, %arg1: i32) -> (i32, i32) {
    %c0_i32 = arith.constant 0 : i32
    %c0_i32_0 = arith.constant 0 : i32
    %c0_i32_1 = arith.constant 0 : i32
    return %c0_i32, %c0_i32_0 : i32, i32
  }
  func.func @transform_2(%arg0: i32, %arg1: i32) -> (i32, i32) {
    %c0_i32 = arith.constant 0 : i32
    %c0_i32_0 = arith.constant 0 : i32
    %c0_i32_1 = arith.constant 0 : i32
    return %c0_i32, %c0_i32_0 : i32, i32
  }
  func.func @transform_3(%arg0: i32, %arg1: i32) -> (i32, i32) {
    %c0_i32 = arith.constant 0 : i32
    %c0_i32_0 = arith.constant 0 : i32
    %c0_i32_1 = arith.constant 0 : i32
    return %c0_i32, %c0_i32_0 : i32, i32
  }
  func.func @transform_4(%arg0: i32, %arg1: i32) -> (i32, i32, i32) {
    %c0_i32 = arith.constant 0 : i32
    %c0_i32_0 = arith.constant 0 : i32
    return %arg1, %arg0, %c0_i32 : i32, i32, i32
  }
}

</mosaic_0001>

<llo_original>
// kernel: tpu_custom_call.1
$region0: #{tpu_custom_call.1}
  #allocation0 [shape = 'u32[]', space=smem, size = 0x4, offset = 0x4, fixed_abs, tag = 'smem constant byte address 0x4 - core index']
  #allocation1 [shape = 'u32[144,128]{1,0:T(1,128)}', space=vmem, size = 0x12000, scoped, tag = 'internal scratch']
  #allocation2 [shape = 'f32[512,64]{1,0:T(8,128)}', space=vmem, size = 0x40000, scoped, tag = 'scratch operand']
  #allocation3 [shape = 'f32[512,64]{1,0:T(8,128)}', space=vmem, size = 0x40000, scoped, tag = 'scratch operand']
  %s0 = inlined_call_operand.vmem [shape: bf16[1,512,147], index: 0, kind: input, shape index: {}]
  %s1 = inlined_call_operand.vmem [shape: bf16[147,64], index: 1, kind: input, shape index: {}]
  %s2 = inlined_call_operand.vmem [shape: f32[1,64], index: 2, kind: input, shape index: {}]
  %s3 = inlined_call_operand.vmem [shape: f32[1,64], index: 3, kind: input, shape index: {}]
  %s4 = inlined_call_operand.vmem [shape: bf16[4,512,64], index: 4, kind: output, shape index: {}]
  %s5 = sld [smem:[#allocation0]]
  $region53: #{tpu_custom_call.1} parent=0
    _
  %s7 = ssub.s32 1, %s5
  %s8 = scalar_select 0, %s7, %s5
  loop: start=0, step=1, limit=6
  $region2: #{tpu_custom_call.1} parent=0 // loop_pre_header
    _
  $region3: #{tpu_custom_call.1} parent=0 // loop_header
    %s10 = sphi 0, %s14
    %p11 = scmp.ge.s32.totalorder %s10, 6
    %s17 = sphi 0, %s29
    %s18 = sphi 0, %s25
    %s19 = sphi 0, %s17
    %s20 = sphi 0, %s18
    %s21 = sphi 0, %s19
    %s22 = sphi 0, %s20
    %s32 = sphi 0, %s34
    %s35 = sphi 0, %s32
    %s36 = sphi 0, %s35
    %s52 = sphi 0, %s36
    %s56 = sphi 0, %s56
    %s58 = sphi 0, %s56
    %s59 = sphi 0, %s58
    %s73 = sphi 0, %s59
    %s77 = sphi 0, %s77
    %s79 = sphi 0, %s77
    %s80 = sphi 0, %s79
    %s94 = sphi 0, %s80
    %s98 = sphi 0, %s98
    %s100 = sphi 0, %s98
    %s101 = sphi 0, %s100
    %s115 = sphi 0, %s101
    %s123 = sphi 0, %s125
    %s126 = sphi 0, %s123
    %s127 = sphi 0, %s126
    %s143 = sphi 0, %s127
  $region4: #{tpu_custom_call.1} parent=0 // loop_header_branch
    %13 = sbr.rel (%p11) target = $region8
  $region5: #{tpu_custom_call.1} parent=0 // loop_body
    %s15 = ssub.s32 %s10, 1
    %s16 = ssub.s32 %s10, 2
    %s23 = sadd.s32 1, %s18
    %p24 = scmp.ge.s32.totalorder %s23, 4
    %s25 = scalar_select %p24, 0, %s23
    %s26 = sadd.s32 1, %s17
    %s27 = scalar_select %p24, %s26, %s17
    %p28 = scmp.ge.s32.totalorder %s27, 1
    %s29 = scalar_select %p28, 0, %s27
    %s30 = ssub.s32 %s17, %s29
    %p31 = scmp.eq.s32.totalorder %s30, 0
    %s33 = sadd.s32 %s32, 1
    %s34 = scalar_select %p31, %s32, %s33
    %p37 = pneg %p31
    %p38 = scmp.eq.s32.totalorder %s10, 3
    %p39 = por %p37, %p38
    %p40 = scmp.ne.s32.totalorder %s32, %s35
    %p41 = scmp.eq.s32.totalorder %s10, 0
    %p42 = por %p40, %p41
    %p43 = scmp.ne.s32.totalorder %s32, %s35
    %p44 = scmp.eq.s32.totalorder %s15, 3
    %p45 = por %p43, %p44
    %p46 = scmp.ne.s32.totalorder %s35, %s36
    %p47 = scmp.eq.s32.totalorder %s15, 0
    %p48 = por %p46, %p47
    %p49 = scmp.ne.s32.totalorder %s35, %s36
    %p50 = scmp.eq.s32.totalorder %s16, 3
    %p51 = por %p49, %p50
    %p53 = scmp.ne.s32.totalorder %s36, %s52
    %p54 = scmp.eq.s32.totalorder %s16, 0
    %p55 = por %p53, %p54
    %s57 = sadd.s32 %s56, 1
    %p60 = scmp.eq.s32.totalorder %s10, 3
    %p61 = scmp.ne.s32.totalorder %s56, %s58
    %p62 = scmp.eq.s32.totalorder %s10, 0
    %p63 = por %p61, %p62
    %p64 = scmp.ne.s32.totalorder %s56, %s58
    %p65 = scmp.eq.s32.totalorder %s15, 3
    %p66 = por %p64, %p65
    %p67 = scmp.ne.s32.totalorder %s58, %s59
    %p68 = scmp.eq.s32.totalorder %s15, 0
    %p69 = por %p67, %p68
    %p70 = scmp.ne.s32.totalorder %s58, %s59
    %p71 = scmp.eq.s32.totalorder %s16, 3
    %p72 = por %p70, %p71
    %p74 = scmp.ne.s32.totalorder %s59, %s73
    %p75 = scmp.eq.s32.totalorder %s16, 0
    %p76 = por %p74, %p75
    %s78 = sadd.s32 %s77, 1
    %p81 = scmp.eq.s32.totalorder %s10, 3
    %p82 = scmp.ne.s32.totalorder %s77, %s79
    %p83 = scmp.eq.s32.totalorder %s10, 0
    %p84 = por %p82, %p83
    %p85 = scmp.ne.s32.totalorder %s77, %s79
    %p86 = scmp.eq.s32.totalorder %s15, 3
    %p87 = por %p85, %p86
    %p88 = scmp.ne.s32.totalorder %s79, %s80
    %p89 = scmp.eq.s32.totalorder %s15, 0
    %p90 = por %p88, %p89
    %p91 = scmp.ne.s32.totalorder %s79, %s80
    %p92 = scmp.eq.s32.totalorder %s16, 3
    %p93 = por %p91, %p92
    %p95 = scmp.ne.s32.totalorder %s80, %s94
    %p96 = scmp.eq.s32.totalorder %s16, 0
    %p97 = por %p95, %p96
    %s99 = sadd.s32 %s98, 1
    %p102 = scmp.eq.s32.totalorder %s10, 3
    %p103 = scmp.ne.s32.totalorder %s98, %s100
    %p104 = scmp.eq.s32.totalorder %s10, 0
    %p105 = por %p103, %p104
    %p106 = scmp.ne.s32.totalorder %s98, %s100
    %p107 = scmp.eq.s32.totalorder %s15, 3
    %p108 = por %p106, %p107
    %p109 = scmp.ne.s32.totalorder %s100, %s101
    %p110 = scmp.eq.s32.totalorder %s15, 0
    %p111 = por %p109, %p110
    %p112 = scmp.ne.s32.totalorder %s100, %s101
    %p113 = scmp.eq.s32.totalorder %s16, 3
    %p114 = por %p112, %p113
    %p116 = scmp.ne.s32.totalorder %s101, %s115
    %p117 = scmp.eq.s32.totalorder %s16, 0
    %p118 = por %p116, %p117
    %s119 = ssub.s32 %s18, %s25
    %s120 = ssub.s32 %s17, %s29
    %s121 = sor.u32 %s119, %s120
    %p122 = scmp.eq.s32.totalorder %s121, 0
    %s124 = sadd.s32 %s123, 1
    %s125 = scalar_select %p122, %s123, %s124
    %p128 = pneg %p122
    %p129 = scmp.eq.s32.totalorder %s10, 3
    %p130 = por %p128, %p129
    %p131 = scmp.ne.s32.totalorder %s123, %s126
    %p132 = scmp.eq.s32.totalorder %s10, 0
    %p133 = por %p131, %p132
    %p134 = scmp.ne.s32.totalorder %s123, %s126
    %p135 = scmp.eq.s32.totalorder %s15, 3
    %p136 = por %p134, %p135
    %p137 = scmp.ne.s32.totalorder %s126, %s127
    %p138 = scmp.eq.s32.totalorder %s15, 0
    %p139 = por %p137, %p138
    %p140 = scmp.ne.s32.totalorder %s126, %s127
    %p141 = scmp.eq.s32.totalorder %s16, 3
    %p142 = por %p140, %p141
    %p144 = scmp.ne.s32.totalorder %s127, %s143
    %p145 = scmp.eq.s32.totalorder %s16, 0
    %p146 = por %p144, %p145
    %p147 = scmp.le.s32.totalorder 1, %s10
    %p148 = scmp.lt.s32.totalorder %s10, 5
    %p149 = pnand %p147, %p148
    %p150 = pneg %p149
    // Predicated region
    $region9: #{tpu_custom_call.1} parent=5 // pred_check
      _
    $region10: #{tpu_custom_call.1} parent=5 // pred_check_branch
      %152 = sbr.rel (%p149) target = $region12
    $region11: #{tpu_custom_call.1} parent=5 // pred_region
      %s153 = ssub.s32 %s10, 1
      // Predicated region
      $region13: #{tpu_custom_call.1} parent=11 // pred_check
        %p154 = pneg %p48
      $region14: #{tpu_custom_call.1} parent=11 // pred_check_branch
        %156 = sbr.rel (%p154) target = $region16
      $region15: #{tpu_custom_call.1} parent=11 // pred_region
        %s157 = smul.u32 64, %s19
        %p158 = scmp.lt.s32.totalorder %s157, 63
        %s159 = scalar_select %p158, %s157, 63
        %s160 = smul.addr %s159, 2
        %s161 = smul.addr %s160, 4
        %s162 = scalar_lea.vmem %s0, %s161
        %s163 = smul.u32 64, %s19
      $region16: #{tpu_custom_call.1} parent=11 // pred_fallthru
        _
      // Predicated region
      $region17: #{tpu_custom_call.1} parent=11 // pred_check
        %p164 = pneg %p69
      $region18: #{tpu_custom_call.1} parent=11 // pred_check_branch
        %166 = sbr.rel (%p164) target = $region20
      $region19: #{tpu_custom_call.1} parent=11 // pred_region
        _
      $region20: #{tpu_custom_call.1} parent=11 // pred_fallthru
        _
      // Predicated region
      $region21: #{tpu_custom_call.1} parent=11 // pred_check
        %p167 = pneg %p90
      $region22: #{tpu_custom_call.1} parent=11 // pred_check_branch
        %169 = sbr.rel (%p167) target = $region24
      $region23: #{tpu_custom_call.1} parent=11 // pred_region
        _
      $region24: #{tpu_custom_call.1} parent=11 // pred_fallthru
        _
      // Predicated region
      $region25: #{tpu_custom_call.1} parent=11 // pred_check
        %p170 = pneg %p111
      $region26: #{tpu_custom_call.1} parent=11 // pred_check_branch
        %172 = sbr.rel (%p170) target = $region28
      $region27: #{tpu_custom_call.1} parent=11 // pred_region
        _
      $region28: #{tpu_custom_call.1} parent=11 // pred_fallthru
        _
    $region12: #{tpu_custom_call.1} parent=5 // pred_fallthru
      _
    %p173 = scmp.lt.s32.totalorder %s10, 4
    // Predicated region
    $region29: #{tpu_custom_call.1} parent=5 // pred_check
      %p174 = pneg %p173
    $region30: #{tpu_custom_call.1} parent=5 // pred_check_branch
      %176 = sbr.rel (%p174) target = $region32
    $region31: #{tpu_custom_call.1} parent=5 // pred_region
      _
    $region32: #{tpu_custom_call.1} parent=5 // pred_fallthru
      _
    %p177 = scmp.le.s32.totalorder 1, %s10
    %p178 = scmp.lt.s32.totalorder %s10, 5
    %p179 = pnand %p177, %p178
    %p180 = pneg %p179
    // Predicated region
    $region33: #{tpu_custom_call.1} parent=5 // pred_check
      _
    $region34: #{tpu_custom_call.1} parent=5 // pred_check_branch
      %182 = sbr.rel (%p179) target = $region36
    $region35: #{tpu_custom_call.1} parent=5 // pred_region
      %s183 = ssub.s32 %s10, 1
      %s184 = smul.u32 64, %s19
      %p185 = scmp.lt.s32.totalorder %s184, 63
      %s186 = scalar_select %p185, %s184, 63
      %s187 = smul.addr %s186, 2
      %s188 = smul.addr %s187, 4
      %s189 = scalar_lea.vmem %s0, %s188
      %p190 = pneg %p48
      %p191 = pneg %p45
      %p192 = pneg %p69
      %p193 = pneg %p66
      %p194 = pneg %p90
      %p195 = pneg %p87
      %p196 = pneg %p111
      %p197 = pneg %p108
      %p198 = pneg %p139
      %p199 = pneg %p136
      %s200 = smul.u32 64, %s19
      %p201 = scmp.lt.s32.totalorder %s20, 3
      %s202 = scalar_select %p201, %s20, 3
      %p203 = scmp.lt.s32.totalorder %s200, 63
      %s204 = scalar_select %p203, %s200, 63
      %s205 = smul.addr %s202, 64
      %s206 = sadd.s32 %s204, %s205
      %s207 = smul.addr %s206, 4
      %s208 = scalar_lea.vmem %s4, %s207
      %s209 = smul.u32 64, %s19
      %p210 = scmp.lt.s32.totalorder %s209, 63
      %s211 = scalar_select %p210, %s209, 63
      %s212 = smul.addr %s211, 2
      %s213 = smul.addr %s212, 4
      %s214 = scalar_lea.vmem %s0, %s213
      %s215 = smul.u32 64, %s19
      %s216 = smul.u32 64, %s19
      %p217 = scmp.lt.s32.totalorder %s20, 3
      %s218 = scalar_select %p217, %s20, 3
      %p219 = scmp.lt.s32.totalorder %s216, 63
      %s220 = scalar_select %p219, %s216, 63
      %s221 = smul.addr %s218, 64
      %s222 = sadd.s32 %s220, %s221
      %s223 = smul.addr %s222, 4
      %s224 = scalar_lea.vmem %s4, %s223
      %s225 = smul.u32 64, %s19
      %p227 = scmp.eq.s32.totalorder %s20, 0
      // Predicated region
      $region37: #{tpu_custom_call.1} parent=35 // pred_check
        %p228 = pneg %p227
      $region38: #{tpu_custom_call.1} parent=35 // pred_check_branch
        %230 = sbr.rel (%p228) target = $region40
      $region39: #{tpu_custom_call.1} parent=35 // pred_region
        %vm231 = vcmask 523264
        %232 = vst.msk [vmem:[#allocation2] sm:$0xff] %vm231, 0.0
        %233 = vst.msk [vmem:[#allocation2 + $0x8] sm:$0xff] %vm231, 0.0
        %234 = vst.msk [vmem:[#allocation2 + $0x10] sm:$0xff] %vm231, 0.0
        %235 = vst.msk [vmem:[#allocation2 + $0x18] sm:$0xff] %vm231, 0.0
        %236 = vst.msk [vmem:[#allocation2 + $0x20] sm:$0xff] %vm231, 0.0
        %237 = vst.msk [vmem:[#allocation2 + $0x28] sm:$0xff] %vm231, 0.0
        %238 = vst.msk [vmem:[#allocation2 + $0x30] sm:$0xff] %vm231, 0.0
        %239 = vst.msk [vmem:[#allocation2 + $0x38] sm:$0xff] %vm231, 0.0
        %240 = vst.msk [vmem:[#allocation2 + $0x40] sm:$0xff] %vm231, 0.0
        %241 = vst.msk [vmem:[#allocation2 + $0x48] sm:$0xff] %vm231, 0.0
        %242 = vst.msk [vmem:[#allocation2 + $0x50] sm:$0xff] %vm231, 0.0
        %243 = vst.msk [vmem:[#allocation2 + $0x58] sm:$0xff] %vm231, 0.0
        %244 = vst.msk [vmem:[#allocation2 + $0x60] sm:$0xff] %vm231, 0.0
        %245 = vst.msk [vmem:[#allocation2 + $0x68] sm:$0xff] %vm231, 0.0
        %246 = vst.msk [vmem:[#allocation2 + $0x70] sm:$0xff] %vm231, 0.0
        %247 = vst.msk [vmem:[#allocation2 + $0x78] sm:$0xff] %vm231, 0.0
        %248 = vst.msk [vmem:[#allocation2 + $0x80] sm:$0xff] %vm231, 0.0
        %249 = vst.msk [vmem:[#allocation2 + $0x88] sm:$0xff] %vm231, 0.0
        %250 = vst.msk [vmem:[#allocation2 + $0x90] sm:$0xff] %vm231, 0.0
        %251 = vst.msk [vmem:[#allocation2 + $0x98] sm:$0xff] %vm231, 0.0
        %252 = vst.msk [vmem:[#allocation2 + $0xa0] sm:$0xff] %vm231, 0.0
        %253 = vst.msk [vmem:[#allocation2 + $0xa8] sm:$0xff] %vm231, 0.0
        %254 = vst.msk [vmem:[#allocation2 + $0xb0] sm:$0xff] %vm231, 0.0
        %255 = vst.msk [vmem:[#allocation2 + $0xb8] sm:$0xff] %vm231, 0.0
        %256 = vst.msk [vmem:[#allocation2 + $0xc0] sm:$0xff] %vm231, 0.0
        %257 = vst.msk [vmem:[#allocation2 + $0xc8] sm:$0xff] %vm231, 0.0
        %258 = vst.msk [vmem:[#allocation2 + $0xd0] sm:$0xff] %vm231, 0.0
        %259 = vst.msk [vmem:[#allocation2 + $0xd8] sm:$0xff] %vm231, 0.0
        %260 = vst.msk [vmem:[#allocation2 + $0xe0] sm:$0xff] %vm231, 0.0
        %261 = vst.msk [vmem:[#allocation2 + $0xe8] sm:$0xff] %vm231, 0.0
        %262 = vst.msk [vmem:[#allocation2 + $0xf0] sm:$0xff] %vm231, 0.0
        %263 = vst.msk [vmem:[#allocation2 + $0xf8] sm:$0xff] %vm231, 0.0
        %264 = vst.msk [vmem:[#allocation2 + $0x100] sm:$0xff] %vm231, 0.0
        %265 = vst.msk [vmem:[#allocation2 + $0x108] sm:$0xff] %vm231, 0.0
        %266 = vst.msk [vmem:[#allocation2 + $0x110] sm:$0xff] %vm231, 0.0
        %267 = vst.msk [vmem:[#allocation2 + $0x118] sm:$0xff] %vm231, 0.0
        %268 = vst.msk [vmem:[#allocation2 + $0x120] sm:$0xff] %vm231, 0.0
        %269 = vst.msk [vmem:[#allocation2 + $0x128] sm:$0xff] %vm231, 0.0
        %270 = vst.msk [vmem:[#allocation2 + $0x130] sm:$0xff] %vm231, 0.0
        %271 = vst.msk [vmem:[#allocation2 + $0x138] sm:$0xff] %vm231, 0.0
        %272 = vst.msk [vmem:[#allocation2 + $0x140] sm:$0xff] %vm231, 0.0
        %273 = vst.msk [vmem:[#allocation2 + $0x148] sm:$0xff] %vm231, 0.0
        %274 = vst.msk [vmem:[#allocation2 + $0x150] sm:$0xff] %vm231, 0.0
        %275 = vst.msk [vmem:[#allocation2 + $0x158] sm:$0xff] %vm231, 0.0
        %276 = vst.msk [vmem:[#allocation2 + $0x160] sm:$0xff] %vm231, 0.0
        %277 = vst.msk [vmem:[#allocation2 + $0x168] sm:$0xff] %vm231, 0.0
        %278 = vst.msk [vmem:[#allocation2 + $0x170] sm:$0xff] %vm231, 0.0
        %279 = vst.msk [vmem:[#allocation2 + $0x178] sm:$0xff] %vm231, 0.0
        %280 = vst.msk [vmem:[#allocation2 + $0x180] sm:$0xff] %vm231, 0.0
        %281 = vst.msk [vmem:[#allocation2 + $0x188] sm:$0xff] %vm231, 0.0
        %282 = vst.msk [vmem:[#allocation2 + $0x190] sm:$0xff] %vm231, 0.0
        %283 = vst.msk [vmem:[#allocation2 + $0x198] sm:$0xff] %vm231, 0.0
        %284 = vst.msk [vmem:[#allocation2 + $0x1a0] sm:$0xff] %vm231, 0.0
        %285 = vst.msk [vmem:[#allocation2 + $0x1a8] sm:$0xff] %vm231, 0.0
        %286 = vst.msk [vmem:[#allocation2 + $0x1b0] sm:$0xff] %vm231, 0.0
        %287 = vst.msk [vmem:[#allocation2 + $0x1b8] sm:$0xff] %vm231, 0.0
        %288 = vst.msk [vmem:[#allocation2 + $0x1c0] sm:$0xff] %vm231, 0.0
        %289 = vst.msk [vmem:[#allocation2 + $0x1c8] sm:$0xff] %vm231, 0.0
        %290 = vst.msk [vmem:[#allocation2 + $0x1d0] sm:$0xff] %vm231, 0.0
        %291 = vst.msk [vmem:[#allocation2 + $0x1d8] sm:$0xff] %vm231, 0.0
        %292 = vst.msk [vmem:[#allocation2 + $0x1e0] sm:$0xff] %vm231, 0.0
        %293 = vst.msk [vmem:[#allocation2 + $0x1e8] sm:$0xff] %vm231, 0.0
        %294 = vst.msk [vmem:[#allocation2 + $0x1f0] sm:$0xff] %vm231, 0.0
        %295 = vst.msk [vmem:[#allocation2 + $0x1f8] sm:$0xff] %vm231, 0.0
        %v296 = vld [vmem:[%s214] sm:$0xff]
        %v297 = vld [vmem:[%s214 + $0x8] sm:$0xff]
        %v298 = vld [vmem:[%s214 + $0x10] sm:$0xff]
        %v299 = vld [vmem:[%s214 + $0x18] sm:$0xff]
        %v300 = vld [vmem:[%s214 + $0x20] sm:$0xff]
        %v301 = vld [vmem:[%s214 + $0x28] sm:$0xff]
        %v302 = vld [vmem:[%s214 + $0x30] sm:$0xff]
        %v303 = vld [vmem:[%s214 + $0x38] sm:$0xff]
        %v304 = vld [vmem:[%s214 + $0x40] sm:$0xff]
        %v305 = vld [vmem:[%s214 + $0x48] sm:$0xff]
        %v306 = vld [vmem:[%s214 + $0x50] sm:$0xff]
        %v307 = vld [vmem:[%s214 + $0x58] sm:$0xff]
        %v308 = vld [vmem:[%s214 + $0x60] sm:$0xff]
        %v309 = vld [vmem:[%s214 + $0x68] sm:$0xff]
        %v310 = vld [vmem:[%s214 + $0x70] sm:$0xff]
        %v311 = vld [vmem:[%s214 + $0x78] sm:$0xff]
        %v312 = vld [vmem:[%s214 + $0x80] sm:$0xff]
        %v313 = vld [vmem:[%s214 + $0x88] sm:$0xff]
        %v314 = vld [vmem:[%s214 + $0x90] sm:$0xff]
        %v315 = vld [vmem:[%s214 + $0x98] sm:$0xff]
        %v316 = vld [vmem:[%s214 + $0xa0] sm:$0xff]
        %v317 = vld [vmem:[%s214 + $0xa8] sm:$0xff]
        %v318 = vld [vmem:[%s214 + $0xb0] sm:$0xff]
        %v319 = vld [vmem:[%s214 + $0xb8] sm:$0xff]
        %v320 = vld [vmem:[%s214 + $0xc0] sm:$0xff]
        %v321 = vld [vmem:[%s214 + $0xc8] sm:$0xff]
        %v322 = vld [vmem:[%s214 + $0xd0] sm:$0xff]
        %v323 = vld [vmem:[%s214 + $0xd8] sm:$0xff]
        %v324 = vld [vmem:[%s214 + $0xe0] sm:$0xff]
        %v325 = vld [vmem:[%s214 + $0xe8] sm:$0xff]
        %v326 = vld [vmem:[%s214 + $0xf0] sm:$0xff]
        %v327 = vld [vmem:[%s214 + $0xf8] sm:$0xff]
        %v328 = vld [vmem:[%s214 + $0x100] sm:$0xff]
        %v329 = vld [vmem:[%s214 + $0x108] sm:$0xff]
        %v330 = vld [vmem:[%s214 + $0x110] sm:$0xff]
        %v331 = vld [vmem:[%s214 + $0x118] sm:$0xff]
        %v332 = vld [vmem:[%s214 + $0x120] sm:$0xff]
        %v333 = vld [vmem:[%s214 + $0x128] sm:$0xff]
        %v334 = vld [vmem:[%s214 + $0x130] sm:$0xff]
        %v335 = vld [vmem:[%s214 + $0x138] sm:$0xff]
        %v336 = vld [vmem:[%s214 + $0x140] sm:$0xff]
        %v337 = vld [vmem:[%s214 + $0x148] sm:$0xff]
        %v338 = vld [vmem:[%s214 + $0x150] sm:$0xff]
        %v339 = vld [vmem:[%s214 + $0x158] sm:$0xff]
        %v340 = vld [vmem:[%s214 + $0x160] sm:$0xff]
        %v341 = vld [vmem:[%s214 + $0x168] sm:$0xff]
        %v342 = vld [vmem:[%s214 + $0x170] sm:$0xff]
        %v343 = vld [vmem:[%s214 + $0x178] sm:$0xff]
        %v344 = vld [vmem:[%s214 + $0x180] sm:$0xff]
        %v345 = vld [vmem:[%s214 + $0x188] sm:$0xff]
        %v346 = vld [vmem:[%s214 + $0x190] sm:$0xff]
        %v347 = vld [vmem:[%s214 + $0x198] sm:$0xff]
        %v348 = vld [vmem:[%s214 + $0x1a0] sm:$0xff]
        %v349 = vld [vmem:[%s214 + $0x1a8] sm:$0xff]
        %v350 = vld [vmem:[%s214 + $0x1b0] sm:$0xff]
        %v351 = vld [vmem:[%s214 + $0x1b8] sm:$0xff]
        %v352 = vld [vmem:[%s214 + $0x1c0] sm:$0xff]
        %v353 = vld [vmem:[%s214 + $0x1c8] sm:$0xff]
        %v354 = vld [vmem:[%s214 + $0x1d0] sm:$0xff]
        %v355 = vld [vmem:[%s214 + $0x1d8] sm:$0xff]
        %v356 = vld [vmem:[%s214 + $0x1e0] sm:$0xff]
        %v357 = vld [vmem:[%s214 + $0x1e8] sm:$0xff]
        %v358 = vld [vmem:[%s214 + $0x1f0] sm:$0xff]
        %v359 = vld [vmem:[%s214 + $0x1f8] sm:$0xff]
        %v360 = vld [vmem:[%s1] sm:$0xf]
        %v361 = vld [vmem:[%s1 + $0x4] sm:$0xf]
        %v362 = vld [vmem:[%s1 + $0x8] sm:$0xf]
        %v363 = vld [vmem:[%s1 + $0xc] sm:$0xf]
        %v364 = vld [vmem:[%s1 + $0x10] sm:$0xf]
        %v365 = vld [vmem:[%s1 + $0x14] sm:$0xf]
        %v366 = vld [vmem:[%s1 + $0x18] sm:$0xf]
        %v367 = vld [vmem:[%s1 + $0x1c] sm:$0xf]
        %v368 = vld [vmem:[%s1 + $0x20] sm:$0xf]
        %v369 = vld [vmem:[%s1 + $0x24] sm:$0xf]
        %v370 = vld [vmem:[%s1 + $0x28] sm:$0xf]
        %v371 = vld [vmem:[%s1 + $0x2c] sm:$0xf]
        %v372 = vld [vmem:[%s1 + $0x30] sm:$0xf]
        %v373 = vld [vmem:[%s1 + $0x34] sm:$0xf]
        %v374 = vld [vmem:[%s1 + $0x38] sm:$0xf]
        %v375 = vld [vmem:[%s1 + $0x3c] sm:$0xf]
        %v376 = vld [vmem:[%s1 + $0x40] sm:$0xf]
        %v377 = vld [vmem:[%s1 + $0x44] sm:$0xf]
        %v378 = vld [vmem:[%s1 + $0x48] sm:$0x3]
        %v443 = vunpack.c.l.b16 %v296
        %v444 = vunpack.c.h.b16 %v296
        %v445 = vunpack.c.l.b16 %v297
        %v446 = vunpack.c.h.b16 %v297
        %v447 = vunpack.c.l.b16 %v298
        %v448 = vunpack.c.h.b16 %v298
        %v449 = vunpack.c.l.b16 %v299
        %v450 = vunpack.c.h.b16 %v299
        %v451 = vunpack.c.l.b16 %v300
        %v452 = vunpack.c.h.b16 %v300
        %v453 = vunpack.c.l.b16 %v301
        %v454 = vunpack.c.h.b16 %v301
        %v455 = vunpack.c.l.b16 %v302
        %v456 = vunpack.c.h.b16 %v302
        %v457 = vunpack.c.l.b16 %v303
        %v458 = vunpack.c.h.b16 %v303
        %v459 = vunpack.c.l.b16 %v304
        %v460 = vunpack.c.h.b16 %v304
        %v461 = vunpack.c.l.b16 %v305
        %v462 = vunpack.c.h.b16 %v305
        %v463 = vunpack.c.l.b16 %v306
        %v464 = vunpack.c.h.b16 %v306
        %v465 = vunpack.c.l.b16 %v307
        %v466 = vunpack.c.h.b16 %v307
        %v467 = vunpack.c.l.b16 %v308
        %v468 = vunpack.c.h.b16 %v308
        %v469 = vunpack.c.l.b16 %v309
        %v470 = vunpack.c.h.b16 %v309
        %v471 = vunpack.c.l.b16 %v310
        %v472 = vunpack.c.h.b16 %v310
        %v473 = vunpack.c.l.b16 %v311
        %v474 = vunpack.c.h.b16 %v311
        %v475 = vunpack.c.l.b16 %v312
        %v476 = vunpack.c.h.b16 %v312
        %v477 = vunpack.c.l.b16 %v313
        %v478 = vunpack.c.h.b16 %v313
        %v479 = vunpack.c.l.b16 %v314
        %v480 = vunpack.c.h.b16 %v314
        %v481 = vunpack.c.l.b16 %v315
        %v482 = vunpack.c.h.b16 %v315
        %v483 = vunpack.c.l.b16 %v316
        %v484 = vunpack.c.h.b16 %v316
        %v485 = vunpack.c.l.b16 %v317
        %v486 = vunpack.c.h.b16 %v317
        %v487 = vunpack.c.l.b16 %v318
        %v488 = vunpack.c.h.b16 %v318
        %v489 = vunpack.c.l.b16 %v319
        %v490 = vunpack.c.h.b16 %v319
        %v491 = vunpack.c.l.b16 %v320
        %v492 = vunpack.c.h.b16 %v320
        %v493 = vunpack.c.l.b16 %v321
        %v494 = vunpack.c.h.b16 %v321
        %v495 = vunpack.c.l.b16 %v322
        %v496 = vunpack.c.h.b16 %v322
        %v497 = vunpack.c.l.b16 %v323
        %v498 = vunpack.c.h.b16 %v323
        %v499 = vunpack.c.l.b16 %v324
        %v500 = vunpack.c.h.b16 %v324
        %v501 = vunpack.c.l.b16 %v325
        %v502 = vunpack.c.h.b16 %v325
        %v503 = vunpack.c.l.b16 %v326
        %v504 = vunpack.c.h.b16 %v326
        %v505 = vunpack.c.l.b16 %v327
        %v506 = vunpack.c.h.b16 %v327
        %v507 = vunpack.c.l.b16 %v328
        %v508 = vunpack.c.h.b16 %v328
        %v509 = vunpack.c.l.b16 %v329
        %v510 = vunpack.c.h.b16 %v329
        %v511 = vunpack.c.l.b16 %v330
        %v512 = vunpack.c.h.b16 %v330
        %v513 = vunpack.c.l.b16 %v331
        %v514 = vunpack.c.h.b16 %v331
        %v515 = vunpack.c.l.b16 %v332
        %v516 = vunpack.c.h.b16 %v332
        %v517 = vunpack.c.l.b16 %v333
        %v518 = vunpack.c.h.b16 %v333
        %v519 = vunpack.c.l.b16 %v334
        %v520 = vunpack.c.h.b16 %v334
        %v521 = vunpack.c.l.b16 %v335
        %v522 = vunpack.c.h.b16 %v335
        %v523 = vunpack.c.l.b16 %v336
        %v524 = vunpack.c.h.b16 %v336
        %v525 = vunpack.c.l.b16 %v337
        %v526 = vunpack.c.h.b16 %v337
        %v527 = vunpack.c.l.b16 %v338
        %v528 = vunpack.c.h.b16 %v338
        %v529 = vunpack.c.l.b16 %v339
        %v530 = vunpack.c.h.b16 %v339
        %v531 = vunpack.c.l.b16 %v340
        %v532 = vunpack.c.h.b16 %v340
        %v533 = vunpack.c.l.b16 %v341
        %v534 = vunpack.c.h.b16 %v341
        %v535 = vunpack.c.l.b16 %v342
        %v536 = vunpack.c.h.b16 %v342
        %v537 = vunpack.c.l.b16 %v343
        %v538 = vunpack.c.h.b16 %v343
        %v539 = vunpack.c.l.b16 %v344
        %v540 = vunpack.c.h.b16 %v344
        %v541 = vunpack.c.l.b16 %v345
        %v542 = vunpack.c.h.b16 %v345
        %v543 = vunpack.c.l.b16 %v346
        %v544 = vunpack.c.h.b16 %v346
        %v545 = vunpack.c.l.b16 %v347
        %v546 = vunpack.c.h.b16 %v347
        %v547 = vunpack.c.l.b16 %v348
        %v548 = vunpack.c.h.b16 %v348
        %v549 = vunpack.c.l.b16 %v349
        %v550 = vunpack.c.h.b16 %v349
        %v551 = vunpack.c.l.b16 %v350
        %v552 = vunpack.c.h.b16 %v350
        %v553 = vunpack.c.l.b16 %v351
        %v554 = vunpack.c.h.b16 %v351
        %v555 = vunpack.c.l.b16 %v352
        %v556 = vunpack.c.h.b16 %v352
        %v557 = vunpack.c.l.b16 %v353
        %v558 = vunpack.c.h.b16 %v353
        %v559 = vunpack.c.l.b16 %v354
        %v560 = vunpack.c.h.b16 %v354
        %v561 = vunpack.c.l.b16 %v355
        %v562 = vunpack.c.h.b16 %v355
        %v563 = vunpack.c.l.b16 %v356
        %v564 = vunpack.c.h.b16 %v356
        %v565 = vunpack.c.l.b16 %v357
        %v566 = vunpack.c.h.b16 %v357
        %v567 = vunpack.c.l.b16 %v358
        %v568 = vunpack.c.h.b16 %v358
        %v569 = vunpack.c.l.b16 %v359
        %v570 = vunpack.c.h.b16 %v359
        %v571 = vpack.c.b16 %v445, %v443
        %v572 = vpack.c.b16 %v446, %v444
        %v573 = vpack.c.b16 %v449, %v447
        %v574 = vpack.c.b16 %v450, %v448
        %v575 = vpack.c.b16 %v453, %v451
        %v576 = vpack.c.b16 %v454, %v452
        %v577 = vpack.c.b16 %v457, %v455
        %v578 = vpack.c.b16 %v458, %v456
        %v579 = vpack.c.b16 %v461, %v459
        %v580 = vpack.c.b16 %v462, %v460
        %v581 = vpack.c.b16 %v465, %v463
        %v582 = vpack.c.b16 %v466, %v464
        %v583 = vpack.c.b16 %v469, %v467
        %v584 = vpack.c.b16 %v470, %v468
        %v585 = vpack.c.b16 %v473, %v471
        %v586 = vpack.c.b16 %v474, %v472
        %v587 = vpack.c.b16 %v477, %v475
        %v588 = vpack.c.b16 %v478, %v476
        %v589 = vpack.c.b16 %v481, %v479
        %v590 = vpack.c.b16 %v482, %v480
        %v591 = vpack.c.b16 %v485, %v483
        %v592 = vpack.c.b16 %v486, %v484
        %v593 = vpack.c.b16 %v489, %v487
        %v594 = vpack.c.b16 %v490, %v488
        %v595 = vpack.c.b16 %v493, %v491
        %v596 = vpack.c.b16 %v494, %v492
        %v597 = vpack.c.b16 %v497, %v495
        %v598 = vpack.c.b16 %v498, %v496
        %v599 = vpack.c.b16 %v501, %v499
        %v600 = vpack.c.b16 %v502, %v500
        %v601 = vpack.c.b16 %v505, %v503
        %v602 = vpack.c.b16 %v506, %v504
        %v603 = vpack.c.b16 %v509, %v507
        %v604 = vpack.c.b16 %v510, %v508
        %v605 = vpack.c.b16 %v513, %v511
        %v606 = vpack.c.b16 %v514, %v512
        %v607 = vpack.c.b16 %v517, %v515
        %v608 = vpack.c.b16 %v518, %v516
        %v609 = vpack.c.b16 %v521, %v519
        %v610 = vpack.c.b16 %v522, %v520
        %v611 = vpack.c.b16 %v525, %v523
        %v612 = vpack.c.b16 %v526, %v524
        %v613 = vpack.c.b16 %v529, %v527
        %v614 = vpack.c.b16 %v530, %v528
        %v615 = vpack.c.b16 %v533, %v531
        %v616 = vpack.c.b16 %v534, %v532
        %v617 = vpack.c.b16 %v537, %v535
        %v618 = vpack.c.b16 %v538, %v536
        %v619 = vpack.c.b16 %v541, %v539
        %v620 = vpack.c.b16 %v542, %v540
        %v621 = vpack.c.b16 %v545, %v543
        %v622 = vpack.c.b16 %v546, %v544
        %v623 = vpack.c.b16 %v549, %v547
        %v624 = vpack.c.b16 %v550, %v548
        %v625 = vpack.c.b16 %v553, %v551
        %v626 = vpack.c.b16 %v554, %v552
        %v627 = vpack.c.b16 %v557, %v555
        %v628 = vpack.c.b16 %v558, %v556
        %v629 = vpack.c.b16 %v561, %v559
        %v630 = vpack.c.b16 %v562, %v560
        %v631 = vpack.c.b16 %v565, %v563
        %v632 = vpack.c.b16 %v566, %v564
        %v633 = vpack.c.b16 %v569, %v567
        %v634 = vpack.c.b16 %v570, %v568
        %v686 = vunpack.c.l.b16 %v360
        %v687 = vunpack.c.l.b16 %v361
        %v688 = vunpack.c.l.b16 %v362
        %v689 = vunpack.c.l.b16 %v363
        %v690 = vunpack.c.l.b16 %v364
        %v691 = vunpack.c.l.b16 %v365
        %v692 = vunpack.c.l.b16 %v366
        %v693 = vunpack.c.l.b16 %v367
        %v694 = vunpack.c.l.b16 %v368
        %v695 = vunpack.c.l.b16 %v369
        %v696 = vunpack.c.l.b16 %v370
        %v697 = vunpack.c.l.b16 %v371
        %v698 = vunpack.c.l.b16 %v372
        %v699 = vunpack.c.l.b16 %v373
        %v700 = vunpack.c.l.b16 %v374
        %v701 = vunpack.c.l.b16 %v375
        %v702 = vunpack.c.l.b16 %v376
        %v703 = vunpack.c.l.b16 %v377
        %v704 = vunpack.c.l.b16 %v378
        %v705 = vpack.c.b16 %v687, %v686
        %v706 = vpack.c.b16 %v689, %v688
        %v707 = vpack.c.b16 %v691, %v690
        %v708 = vpack.c.b16 %v693, %v692
        %v709 = vpack.c.b16 %v695, %v694
        %v710 = vpack.c.b16 %v697, %v696
        %v711 = vpack.c.b16 %v699, %v698
        %v712 = vpack.c.b16 %v701, %v700
        %v713 = vpack.c.b16 %v703, %v702
        %v714 = vpack.c.b16 %v704, %v704
        %vm724 = vcmask 154624
        %v726 = vsel %vm724, %v572, 0
        %v729 = vsel %vm724, %v574, 0
        %v732 = vsel %vm724, %v576, 0
        %v735 = vsel %vm724, %v578, 0
        %v738 = vsel %vm724, %v580, 0
        %v741 = vsel %vm724, %v582, 0
        %v744 = vsel %vm724, %v584, 0
        %v747 = vsel %vm724, %v586, 0
        %v750 = vsel %vm724, %v588, 0
        %v753 = vsel %vm724, %v590, 0
        %v756 = vsel %vm724, %v592, 0
        %v759 = vsel %vm724, %v594, 0
        %v762 = vsel %vm724, %v596, 0
        %v765 = vsel %vm724, %v598, 0
        %v768 = vsel %vm724, %v600, 0
        %v771 = vsel %vm724, %v602, 0
        %v774 = vsel %vm724, %v604, 0
        %v777 = vsel %vm724, %v606, 0
        %v780 = vsel %vm724, %v608, 0
        %v783 = vsel %vm724, %v610, 0
        %v786 = vsel %vm724, %v612, 0
        %v789 = vsel %vm724, %v614, 0
        %v792 = vsel %vm724, %v616, 0
        %v795 = vsel %vm724, %v618, 0
        %v798 = vsel %vm724, %v620, 0
        %v801 = vsel %vm724, %v622, 0
        %v804 = vsel %vm724, %v624, 0
        %v807 = vsel %vm724, %v626, 0
        %v810 = vsel %vm724, %v628, 0
        %v813 = vsel %vm724, %v630, 0
        %v816 = vsel %vm724, %v632, 0
        %v819 = vsel %vm724, %v634, 0
        %vm821 = vcmask 1040384
        %vm822 = vcmask 1041408
        %v823 = vsel %vm821, 4294967295, 65535
        %v824 = vsel %vm822, %v823, 0
        %v826 = vand.u32 %v714, %v824
        %828 = vmatprep.subr.bf16.mxu0 0
        %829 = vmatpush1.bf16.msra.mxu0 %v712
        %830 = vmatprep.subr.bf16.mxu0 0
        %831 = vmatpush1.bf16.msra.mxu0 %v711
        %832 = vmatprep.subr.bf16.mxu0 0
        %833 = vmatpush1.bf16.msra.mxu0 %v710
        %834 = vmatprep.subr.bf16.mxu0 0
        %835 = vmatpush1.bf16.msra.mxu0 %v709
        %836 = vmatprep.subr.bf16.mxu0 0
        %837 = vmatpush1.bf16.msra.mxu0 %v708
        %838 = vmatprep.subr.bf16.mxu0 0
        %839 = vmatpush1.bf16.msra.mxu0 %v707
        %840 = vmatprep.subr.bf16.mxu0 0
        %841 = vmatpush1.bf16.msra.mxu0 %v706
        %842 = vmatprep.subr.bf16.mxu0 0
        %843 = vmatpush1.bf16.msra.mxu0 %v705
        %844 = vmatprep.subr.bf16.mxu0 0
        %845 = vmatpush2.bf16.msra.mxu0 0
        %846 = vmatprep.subr.bf16.mxu0 0
        %847 = vmatpush2.bf16.msra.mxu0 0
        %848 = vmatprep.subr.bf16.mxu0 0
        %849 = vmatpush2.bf16.msra.mxu0 0
        %850 = vmatprep.subr.bf16.mxu0 0
        %851 = vmatpush2.bf16.msra.mxu0 0
        %852 = vmatprep.subr.bf16.mxu0 0
        %853 = vmatpush2.bf16.msra.mxu0 0
        %854 = vmatprep.subr.bf16.mxu0 0
        %855 = vmatpush2.bf16.msra.mxu0 0
        %856 = vmatprep.subr.bf16.mxu0 0
        %857 = vmatpush2.bf16.msra.mxu0 %v826
        %858 = vmatprep.subr.bf16.mxu0 0
        %859 = vmatpush2.bf16.msra.mxu0 %v713
        %860 = vmatprep.mubr.bf16.mxu0 %v726
        %861 = vmatmul.mubr.bf16.gmra.mxu0 %v571
        %v862 = vpop.f32.mrf.mxu0
        %v863 = vadd.f32 0.0, %v862
        %v864 = vpop.f32.mrf.mxu0
        %v865 = vpop.f32.mrf.mxu0
        %v866 = vadd.f32 0.0, %v865
        %v867 = vpop.f32.mrf.mxu0
        %868 = vmatprep.mubr.bf16.mxu0 %v729
        %869 = vmatmul.mubr.bf16.gmra.mxu0 %v573
        %v870 = vpop.f32.mrf.mxu0
        %v871 = vadd.f32 0.0, %v870
        %v872 = vpop.f32.mrf.mxu0
        %v873 = vpop.f32.mrf.mxu0
        %v874 = vadd.f32 0.0, %v873
        %v875 = vpop.f32.mrf.mxu0
        %876 = vmatprep.mubr.bf16.mxu0 %v732
        %877 = vmatmul.mubr.bf16.gmra.mxu0 %v575
        %v878 = vpop.f32.mrf.mxu0
        %v879 = vadd.f32 0.0, %v878
        %v880 = vpop.f32.mrf.mxu0
        %v881 = vpop.f32.mrf.mxu0
        %v882 = vadd.f32 0.0, %v881
        %v883 = vpop.f32.mrf.mxu0
        %884 = vmatprep.mubr.bf16.mxu0 %v735
        %885 = vmatmul.mubr.bf16.gmra.mxu0 %v577
        %v886 = vpop.f32.mrf.mxu0
        %v887 = vadd.f32 0.0, %v886
        %v888 = vpop.f32.mrf.mxu0
        %v889 = vpop.f32.mrf.mxu0
        %v890 = vadd.f32 0.0, %v889
        %v891 = vpop.f32.mrf.mxu0
        %892 = vmatprep.mubr.bf16.mxu0 %v738
        %893 = vmatmul.mubr.bf16.gmra.mxu0 %v579
        %v894 = vpop.f32.mrf.mxu0
        %v895 = vadd.f32 0.0, %v894
        %v896 = vpop.f32.mrf.mxu0
        %v897 = vpop.f32.mrf.mxu0
        %v898 = vadd.f32 0.0, %v897
        %v899 = vpop.f32.mrf.mxu0
        %900 = vmatprep.mubr.bf16.mxu0 %v741
        %901 = vmatmul.mubr.bf16.gmra.mxu0 %v581
        %v902 = vpop.f32.mrf.mxu0
        %v903 = vadd.f32 0.0, %v902
        %v904 = vpop.f32.mrf.mxu0
        %v905 = vpop.f32.mrf.mxu0
        %v906 = vadd.f32 0.0, %v905
        %v907 = vpop.f32.mrf.mxu0
        %908 = vmatprep.mubr.bf16.mxu0 %v744
        %909 = vmatmul.mubr.bf16.gmra.mxu0 %v583
        %v910 = vpop.f32.mrf.mxu0
        %v911 = vadd.f32 0.0, %v910
        %v912 = vpop.f32.mrf.mxu0
        %v913 = vpop.f32.mrf.mxu0
        %v914 = vadd.f32 0.0, %v913
        %v915 = vpop.f32.mrf.mxu0
        %916 = vmatprep.mubr.bf16.mxu0 %v747
        %917 = vmatmul.mubr.bf16.gmra.mxu0 %v585
        %v918 = vpop.f32.mrf.mxu0
        %v919 = vadd.f32 0.0, %v918
        %v920 = vpop.f32.mrf.mxu0
        %v921 = vpop.f32.mrf.mxu0
        %v922 = vadd.f32 0.0, %v921
        %v923 = vpop.f32.mrf.mxu0
        %924 = vmatprep.mubr.bf16.mxu0 %v750
        %925 = vmatmul.mubr.bf16.gmra.mxu0 %v587
        %v926 = vpop.f32.mrf.mxu0
        %v927 = vadd.f32 0.0, %v926
        %v928 = vpop.f32.mrf.mxu0
        %v929 = vpop.f32.mrf.mxu0
        %v930 = vadd.f32 0.0, %v929
        %v931 = vpop.f32.mrf.mxu0
        %932 = vmatprep.mubr.bf16.mxu0 %v753
        %933 = vmatmul.mubr.bf16.gmra.mxu0 %v589
        %v934 = vpop.f32.mrf.mxu0
        %v935 = vadd.f32 0.0, %v934
        %v936 = vpop.f32.mrf.mxu0
        %v937 = vpop.f32.mrf.mxu0
        %v938 = vadd.f32 0.0, %v937
        %v939 = vpop.f32.mrf.mxu0
        %940 = vmatprep.mubr.bf16.mxu0 %v756
        %941 = vmatmul.mubr.bf16.gmra.mxu0 %v591
        %v942 = vpop.f32.mrf.mxu0
        %v943 = vadd.f32 0.0, %v942
        %v944 = vpop.f32.mrf.mxu0
        %v945 = vpop.f32.mrf.mxu0
        %v946 = vadd.f32 0.0, %v945
        %v947 = vpop.f32.mrf.mxu0
        %948 = vmatprep.mubr.bf16.mxu0 %v759
        %949 = vmatmul.mubr.bf16.gmra.mxu0 %v593
        %v950 = vpop.f32.mrf.mxu0
        %v951 = vadd.f32 0.0, %v950
        %v952 = vpop.f32.mrf.mxu0
        %v953 = vpop.f32.mrf.mxu0
        %v954 = vadd.f32 0.0, %v953
        %v955 = vpop.f32.mrf.mxu0
        %956 = vmatprep.mubr.bf16.mxu0 %v762
        %957 = vmatmul.mubr.bf16.gmra.mxu0 %v595
        %v958 = vpop.f32.mrf.mxu0
        %v959 = vadd.f32 0.0, %v958
        %v960 = vpop.f32.mrf.mxu0
        %v961 = vpop.f32.mrf.mxu0
        %v962 = vadd.f32 0.0, %v961
        %v963 = vpop.f32.mrf.mxu0
        %964 = vmatprep.mubr.bf16.mxu0 %v765
        %965 = vmatmul.mubr.bf16.gmra.mxu0 %v597
        %v966 = vpop.f32.mrf.mxu0
        %v967 = vadd.f32 0.0, %v966
        %v968 = vpop.f32.mrf.mxu0
        %v969 = vpop.f32.mrf.mxu0
        %v970 = vadd.f32 0.0, %v969
        %v971 = vpop.f32.mrf.mxu0
        %972 = vmatprep.mubr.bf16.mxu0 %v768
        %973 = vmatmul.mubr.bf16.gmra.mxu0 %v599
        %v974 = vpop.f32.mrf.mxu0
        %v975 = vadd.f32 0.0, %v974
        %v976 = vpop.f32.mrf.mxu0
        %v977 = vpop.f32.mrf.mxu0
        %v978 = vadd.f32 0.0, %v977
        %v979 = vpop.f32.mrf.mxu0
        %980 = vmatprep.mubr.bf16.mxu0 %v771
        %981 = vmatmul.mubr.bf16.gmra.mxu0 %v601
        %v982 = vpop.f32.mrf.mxu0
        %v983 = vadd.f32 0.0, %v982
        %v984 = vpop.f32.mrf.mxu0
        %v985 = vpop.f32.mrf.mxu0
        %v986 = vadd.f32 0.0, %v985
        %v987 = vpop.f32.mrf.mxu0
        %988 = vmatprep.mubr.bf16.mxu0 %v774
        %989 = vmatmul.mubr.bf16.gmra.mxu0 %v603
        %v990 = vpop.f32.mrf.mxu0
        %v991 = vadd.f32 0.0, %v990
        %v992 = vpop.f32.mrf.mxu0
        %v993 = vpop.f32.mrf.mxu0
        %v994 = vadd.f32 0.0, %v993
        %v995 = vpop.f32.mrf.mxu0
        %996 = vmatprep.mubr.bf16.mxu0 %v777
        %997 = vmatmul.mubr.bf16.gmra.mxu0 %v605
        %v998 = vpop.f32.mrf.mxu0
        %v999 = vadd.f32 0.0, %v998
        %v1000 = vpop.f32.mrf.mxu0
        %v1001 = vpop.f32.mrf.mxu0
        %v1002 = vadd.f32 0.0, %v1001
        %v1003 = vpop.f32.mrf.mxu0
        %1004 = vmatprep.mubr.bf16.mxu0 %v780
        %1005 = vmatmul.mubr.bf16.gmra.mxu0 %v607
        %v1006 = vpop.f32.mrf.mxu0
        %v1007 = vadd.f32 0.0, %v1006
        %v1008 = vpop.f32.mrf.mxu0
        %v1009 = vpop.f32.mrf.mxu0
        %v1010 = vadd.f32 0.0, %v1009
        %v1011 = vpop.f32.mrf.mxu0
        %1012 = vmatprep.mubr.bf16.mxu0 %v783
        %1013 = vmatmul.mubr.bf16.gmra.mxu0 %v609
        %v1014 = vpop.f32.mrf.mxu0
        %v1015 = vadd.f32 0.0, %v1014
        %v1016 = vpop.f32.mrf.mxu0
        %v1017 = vpop.f32.mrf.mxu0
        %v1018 = vadd.f32 0.0, %v1017
        %v1019 = vpop.f32.mrf.mxu0
        %1020 = vmatprep.mubr.bf16.mxu0 %v786
        %1021 = vmatmul.mubr.bf16.gmra.mxu0 %v611
        %v1022 = vpop.f32.mrf.mxu0
        %v1023 = vadd.f32 0.0, %v1022
        %v1024 = vpop.f32.mrf.mxu0
        %v1025 = vpop.f32.mrf.mxu0
        %v1026 = vadd.f32 0.0, %v1025
        %v1027 = vpop.f32.mrf.mxu0
        %1028 = vmatprep.mubr.bf16.mxu0 %v789
        %1029 = vmatmul.mubr.bf16.gmra.mxu0 %v613
        %v1030 = vpop.f32.mrf.mxu0
        %v1031 = vadd.f32 0.0, %v1030
        %v1032 = vpop.f32.mrf.mxu0
        %v1033 = vpop.f32.mrf.mxu0
        %v1034 = vadd.f32 0.0, %v1033
        %v1035 = vpop.f32.mrf.mxu0
        %1036 = vmatprep.mubr.bf16.mxu0 %v792
        %1037 = vmatmul.mubr.bf16.gmra.mxu0 %v615
        %v1038 = vpop.f32.mrf.mxu0
        %v1039 = vadd.f32 0.0, %v1038
        %v1040 = vpop.f32.mrf.mxu0
        %v1041 = vpop.f32.mrf.mxu0
        %v1042 = vadd.f32 0.0, %v1041
        %v1043 = vpop.f32.mrf.mxu0
        %1044 = vmatprep.mubr.bf16.mxu0 %v795
        %1045 = vmatmul.mubr.bf16.gmra.mxu0 %v617
        %v1046 = vpop.f32.mrf.mxu0
        %v1047 = vadd.f32 0.0, %v1046
        %v1048 = vpop.f32.mrf.mxu0
        %v1049 = vpop.f32.mrf.mxu0
        %v1050 = vadd.f32 0.0, %v1049
        %v1051 = vpop.f32.mrf.mxu0
        %1052 = vmatprep.mubr.bf16.mxu0 %v798
        %1053 = vmatmul.mubr.bf16.gmra.mxu0 %v619
        %v1054 = vpop.f32.mrf.mxu0
        %v1055 = vadd.f32 0.0, %v1054
        %v1056 = vpop.f32.mrf.mxu0
        %v1057 = vpop.f32.mrf.mxu0
        %v1058 = vadd.f32 0.0, %v1057
        %v1059 = vpop.f32.mrf.mxu0
        %1060 = vmatprep.mubr.bf16.mxu0 %v801
        %1061 = vmatmul.mubr.bf16.gmra.mxu0 %v621
        %v1062 = vpop.f32.mrf.mxu0
        %v1063 = vadd.f32 0.0, %v1062
        %v1064 = vpop.f32.mrf.mxu0
        %v1065 = vpop.f32.mrf.mxu0
        %v1066 = vadd.f32 0.0, %v1065
        %v1067 = vpop.f32.mrf.mxu0
        %1068 = vmatprep.mubr.bf16.mxu0 %v804
        %1069 = vmatmul.mubr.bf16.gmra.mxu0 %v623
        %v1070 = vpop.f32.mrf.mxu0
        %v1071 = vadd.f32 0.0, %v1070
        %v1072 = vpop.f32.mrf.mxu0
        %v1073 = vpop.f32.mrf.mxu0
        %v1074 = vadd.f32 0.0, %v1073
        %v1075 = vpop.f32.mrf.mxu0
        %1076 = vmatprep.mubr.bf16.mxu0 %v807
        %1077 = vmatmul.mubr.bf16.gmra.mxu0 %v625
        %v1078 = vpop.f32.mrf.mxu0
        %v1079 = vadd.f32 0.0, %v1078
        %v1080 = vpop.f32.mrf.mxu0
        %v1081 = vpop.f32.mrf.mxu0
        %v1082 = vadd.f32 0.0, %v1081
        %v1083 = vpop.f32.mrf.mxu0
        %1084 = vmatprep.mubr.bf16.mxu0 %v810
        %1085 = vmatmul.mubr.bf16.gmra.mxu0 %v627
        %v1086 = vpop.f32.mrf.mxu0
        %v1087 = vadd.f32 0.0, %v1086
        %v1088 = vpop.f32.mrf.mxu0
        %v1089 = vpop.f32.mrf.mxu0
        %v1090 = vadd.f32 0.0, %v1089
        %v1091 = vpop.f32.mrf.mxu0
        %1092 = vmatprep.mubr.bf16.mxu0 %v813
        %1093 = vmatmul.mubr.bf16.gmra.mxu0 %v629
        %v1094 = vpop.f32.mrf.mxu0
        %v1095 = vadd.f32 0.0, %v1094
        %v1096 = vpop.f32.mrf.mxu0
        %v1097 = vpop.f32.mrf.mxu0
        %v1098 = vadd.f32 0.0, %v1097
        %v1099 = vpop.f32.mrf.mxu0
        %1100 = vmatprep.mubr.bf16.mxu0 %v816
        %1101 = vmatmul.mubr.bf16.gmra.mxu0 %v631
        %v1102 = vpop.f32.mrf.mxu0
        %v1103 = vadd.f32 0.0, %v1102
        %v1104 = vpop.f32.mrf.mxu0
        %v1105 = vpop.f32.mrf.mxu0
        %v1106 = vadd.f32 0.0, %v1105
        %v1107 = vpop.f32.mrf.mxu0
        %1108 = vmatprep.mubr.bf16.mxu0 %v819
        %1109 = vmatmul.mubr.bf16.gmra.mxu0 %v633
        %v1110 = vpop.f32.mrf.mxu0
        %v1111 = vadd.f32 0.0, %v1110
        %v1112 = vpop.f32.mrf.mxu0
        %v1113 = vpop.f32.mrf.mxu0
        %v1114 = vadd.f32 0.0, %v1113
        %v1115 = vpop.f32.mrf.mxu0
        %1116 = vdwg.mxu0
        %v1117 = vld [vmem:[%s2] sm:$0x1]
        %v1119 = vlaneseq
        %v1120 = vshrl.u32 %v1119, 7
        %v1121 = vsub.s32 0, %v1120
        %v1122 = vrot.slane %v1117, %v1121
        %v1124 = vmul.f32 %v863, %v1122
        %v1125 = vmul.f32 %v866, %v1122
        %v1126 = vmul.f32 %v871, %v1122
        %v1127 = vmul.f32 %v874, %v1122
        %v1128 = vmul.f32 %v879, %v1122
        %v1129 = vmul.f32 %v882, %v1122
        %v1130 = vmul.f32 %v887, %v1122
        %v1131 = vmul.f32 %v890, %v1122
        %v1132 = vmul.f32 %v895, %v1122
        %v1133 = vmul.f32 %v898, %v1122
        %v1134 = vmul.f32 %v903, %v1122
        %v1135 = vmul.f32 %v906, %v1122
        %v1136 = vmul.f32 %v911, %v1122
        %v1137 = vmul.f32 %v914, %v1122
        %v1138 = vmul.f32 %v919, %v1122
        %v1139 = vmul.f32 %v922, %v1122
        %v1140 = vmul.f32 %v927, %v1122
        %v1141 = vmul.f32 %v930, %v1122
        %v1142 = vmul.f32 %v935, %v1122
        %v1143 = vmul.f32 %v938, %v1122
        %v1144 = vmul.f32 %v943, %v1122
        %v1145 = vmul.f32 %v946, %v1122
        %v1146 = vmul.f32 %v951, %v1122
        %v1147 = vmul.f32 %v954, %v1122
        %v1148 = vmul.f32 %v959, %v1122
        %v1149 = vmul.f32 %v962, %v1122
        %v1150 = vmul.f32 %v967, %v1122
        %v1151 = vmul.f32 %v970, %v1122
        %v1152 = vmul.f32 %v975, %v1122
        %v1153 = vmul.f32 %v978, %v1122
        %v1154 = vmul.f32 %v983, %v1122
        %v1155 = vmul.f32 %v986, %v1122
        %v1156 = vmul.f32 %v991, %v1122
        %v1157 = vmul.f32 %v994, %v1122
        %v1158 = vmul.f32 %v999, %v1122
        %v1159 = vmul.f32 %v1002, %v1122
        %v1160 = vmul.f32 %v1007, %v1122
        %v1161 = vmul.f32 %v1010, %v1122
        %v1162 = vmul.f32 %v1015, %v1122
        %v1163 = vmul.f32 %v1018, %v1122
        %v1164 = vmul.f32 %v1023, %v1122
        %v1165 = vmul.f32 %v1026, %v1122
        %v1166 = vmul.f32 %v1031, %v1122
        %v1167 = vmul.f32 %v1034, %v1122
        %v1168 = vmul.f32 %v1039, %v1122
        %v1169 = vmul.f32 %v1042, %v1122
        %v1170 = vmul.f32 %v1047, %v1122
        %v1171 = vmul.f32 %v1050, %v1122
        %v1172 = vmul.f32 %v1055, %v1122
        %v1173 = vmul.f32 %v1058, %v1122
        %v1174 = vmul.f32 %v1063, %v1122
        %v1175 = vmul.f32 %v1066, %v1122
        %v1176 = vmul.f32 %v1071, %v1122
        %v1177 = vmul.f32 %v1074, %v1122
        %v1178 = vmul.f32 %v1079, %v1122
        %v1179 = vmul.f32 %v1082, %v1122
        %v1180 = vmul.f32 %v1087, %v1122
        %v1181 = vmul.f32 %v1090, %v1122
        %v1182 = vmul.f32 %v1095, %v1122
        %v1183 = vmul.f32 %v1098, %v1122
        %v1184 = vmul.f32 %v1103, %v1122
        %v1185 = vmul.f32 %v1106, %v1122
        %v1186 = vmul.f32 %v1111, %v1122
        %v1187 = vmul.f32 %v1114, %v1122
        %v1188 = vld [vmem:[%s3] sm:$0x1]
        %v1190 = vlaneseq
        %v1191 = vshrl.u32 %v1190, 7
        %v1192 = vsub.s32 0, %v1191
        %v1193 = vrot.slane %v1188, %v1192
        %v1195 = vadd.f32 %v1124, %v1193
        %v1196 = vadd.f32 %v1125, %v1193
        %v1197 = vadd.f32 %v1126, %v1193
        %v1198 = vadd.f32 %v1127, %v1193
        %v1199 = vadd.f32 %v1128, %v1193
        %v1200 = vadd.f32 %v1129, %v1193
        %v1201 = vadd.f32 %v1130, %v1193
        %v1202 = vadd.f32 %v1131, %v1193
        %v1203 = vadd.f32 %v1132, %v1193
        %v1204 = vadd.f32 %v1133, %v1193
        %v1205 = vadd.f32 %v1134, %v1193
        %v1206 = vadd.f32 %v1135, %v1193
        %v1207 = vadd.f32 %v1136, %v1193
        %v1208 = vadd.f32 %v1137, %v1193
        %v1209 = vadd.f32 %v1138, %v1193
        %v1210 = vadd.f32 %v1139, %v1193
        %v1211 = vadd.f32 %v1140, %v1193
        %v1212 = vadd.f32 %v1141, %v1193
        %v1213 = vadd.f32 %v1142, %v1193
        %v1214 = vadd.f32 %v1143, %v1193
        %v1215 = vadd.f32 %v1144, %v1193
        %v1216 = vadd.f32 %v1145, %v1193
        %v1217 = vadd.f32 %v1146, %v1193
        %v1218 = vadd.f32 %v1147, %v1193
        %v1219 = vadd.f32 %v1148, %v1193
        %v1220 = vadd.f32 %v1149, %v1193
        %v1221 = vadd.f32 %v1150, %v1193
        %v1222 = vadd.f32 %v1151, %v1193
        %v1223 = vadd.f32 %v1152, %v1193
        %v1224 = vadd.f32 %v1153, %v1193
        %v1225 = vadd.f32 %v1154, %v1193
        %v1226 = vadd.f32 %v1155, %v1193
        %v1227 = vadd.f32 %v1156, %v1193
        %v1228 = vadd.f32 %v1157, %v1193
        %v1229 = vadd.f32 %v1158, %v1193
        %v1230 = vadd.f32 %v1159, %v1193
        %v1231 = vadd.f32 %v1160, %v1193
        %v1232 = vadd.f32 %v1161, %v1193
        %v1233 = vadd.f32 %v1162, %v1193
        %v1234 = vadd.f32 %v1163, %v1193
        %v1235 = vadd.f32 %v1164, %v1193
        %v1236 = vadd.f32 %v1165, %v1193
        %v1237 = vadd.f32 %v1166, %v1193
        %v1238 = vadd.f32 %v1167, %v1193
        %v1239 = vadd.f32 %v1168, %v1193
        %v1240 = vadd.f32 %v1169, %v1193
        %v1241 = vadd.f32 %v1170, %v1193
        %v1242 = vadd.f32 %v1171, %v1193
        %v1243 = vadd.f32 %v1172, %v1193
        %v1244 = vadd.f32 %v1173, %v1193
        %v1245 = vadd.f32 %v1174, %v1193
        %v1246 = vadd.f32 %v1175, %v1193
        %v1247 = vadd.f32 %v1176, %v1193
        %v1248 = vadd.f32 %v1177, %v1193
        %v1249 = vadd.f32 %v1178, %v1193
        %v1250 = vadd.f32 %v1179, %v1193
        %v1251 = vadd.f32 %v1180, %v1193
        %v1252 = vadd.f32 %v1181, %v1193
        %v1253 = vadd.f32 %v1182, %v1193
        %v1254 = vadd.f32 %v1183, %v1193
        %v1255 = vadd.f32 %v1184, %v1193
        %v1256 = vadd.f32 %v1185, %v1193
        %v1257 = vadd.f32 %v1186, %v1193
        %v1258 = vadd.f32 %v1187, %v1193
        %1259 = vst.msk [vmem:[#allocation3] sm:$0xff] %vm231, %v1195
        %1260 = vst.msk [vmem:[#allocation3 + $0x8] sm:$0xff] %vm231, %v1196
        %1261 = vst.msk [vmem:[#allocation3 + $0x10] sm:$0xff] %vm231, %v1197
        %1262 = vst.msk [vmem:[#allocation3 + $0x18] sm:$0xff] %vm231, %v1198
        %1263 = vst.msk [vmem:[#allocation3 + $0x20] sm:$0xff] %vm231, %v1199
        %1264 = vst.msk [vmem:[#allocation3 + $0x28] sm:$0xff] %vm231, %v1200
        %1265 = vst.msk [vmem:[#allocation3 + $0x30] sm:$0xff] %vm231, %v1201
        %1266 = vst.msk [vmem:[#allocation3 + $0x38] sm:$0xff] %vm231, %v1202
        %1267 = vst.msk [vmem:[#allocation3 + $0x40] sm:$0xff] %vm231, %v1203
        %1268 = vst.msk [vmem:[#allocation3 + $0x48] sm:$0xff] %vm231, %v1204
        %1269 = vst.msk [vmem:[#allocation3 + $0x50] sm:$0xff] %vm231, %v1205
        %1270 = vst.msk [vmem:[#allocation3 + $0x58] sm:$0xff] %vm231, %v1206
        %1271 = vst.msk [vmem:[#allocation3 + $0x60] sm:$0xff] %vm231, %v1207
        %1272 = vst.msk [vmem:[#allocation3 + $0x68] sm:$0xff] %vm231, %v1208
        %1273 = vst.msk [vmem:[#allocation3 + $0x70] sm:$0xff] %vm231, %v1209
        %1274 = vst.msk [vmem:[#allocation3 + $0x78] sm:$0xff] %vm231, %v1210
        %1275 = vst.msk [vmem:[#allocation3 + $0x80] sm:$0xff] %vm231, %v1211
        %1276 = vst.msk [vmem:[#allocation3 + $0x88] sm:$0xff] %vm231, %v1212
        %1277 = vst.msk [vmem:[#allocation3 + $0x90] sm:$0xff] %vm231, %v1213
        %1278 = vst.msk [vmem:[#allocation3 + $0x98] sm:$0xff] %vm231, %v1214
        %1279 = vst.msk [vmem:[#allocation3 + $0xa0] sm:$0xff] %vm231, %v1215
        %1280 = vst.msk [vmem:[#allocation3 + $0xa8] sm:$0xff] %vm231, %v1216
        %1281 = vst.msk [vmem:[#allocation3 + $0xb0] sm:$0xff] %vm231, %v1217
        %1282 = vst.msk [vmem:[#allocation3 + $0xb8] sm:$0xff] %vm231, %v1218
        %1283 = vst.msk [vmem:[#allocation3 + $0xc0] sm:$0xff] %vm231, %v1219
        %1284 = vst.msk [vmem:[#allocation3 + $0xc8] sm:$0xff] %vm231, %v1220
        %1285 = vst.msk [vmem:[#allocation3 + $0xd0] sm:$0xff] %vm231, %v1221
        %1286 = vst.msk [vmem:[#allocation3 + $0xd8] sm:$0xff] %vm231, %v1222
        %1287 = vst.msk [vmem:[#allocation3 + $0xe0] sm:$0xff] %vm231, %v1223
        %1288 = vst.msk [vmem:[#allocation3 + $0xe8] sm:$0xff] %vm231, %v1224
        %1289 = vst.msk [vmem:[#allocation3 + $0xf0] sm:$0xff] %vm231, %v1225
        %1290 = vst.msk [vmem:[#allocation3 + $0xf8] sm:$0xff] %vm231, %v1226
        %1291 = vst.msk [vmem:[#allocation3 + $0x100] sm:$0xff] %vm231, %v1227
        %1292 = vst.msk [vmem:[#allocation3 + $0x108] sm:$0xff] %vm231, %v1228
        %1293 = vst.msk [vmem:[#allocation3 + $0x110] sm:$0xff] %vm231, %v1229
        %1294 = vst.msk [vmem:[#allocation3 + $0x118] sm:$0xff] %vm231, %v1230
        %1295 = vst.msk [vmem:[#allocation3 + $0x120] sm:$0xff] %vm231, %v1231
        %1296 = vst.msk [vmem:[#allocation3 + $0x128] sm:$0xff] %vm231, %v1232
        %1297 = vst.msk [vmem:[#allocation3 + $0x130] sm:$0xff] %vm231, %v1233
        %1298 = vst.msk [vmem:[#allocation3 + $0x138] sm:$0xff] %vm231, %v1234
        %1299 = vst.msk [vmem:[#allocation3 + $0x140] sm:$0xff] %vm231, %v1235
        %1300 = vst.msk [vmem:[#allocation3 + $0x148] sm:$0xff] %vm231, %v1236
        %1301 = vst.msk [vmem:[#allocation3 + $0x150] sm:$0xff] %vm231, %v1237
        %1302 = vst.msk [vmem:[#allocation3 + $0x158] sm:$0xff] %vm231, %v1238
        %1303 = vst.msk [vmem:[#allocation3 + $0x160] sm:$0xff] %vm231, %v1239
        %1304 = vst.msk [vmem:[#allocation3 + $0x168] sm:$0xff] %vm231, %v1240
        %1305 = vst.msk [vmem:[#allocation3 + $0x170] sm:$0xff] %vm231, %v1241
        %1306 = vst.msk [vmem:[#allocation3 + $0x178] sm:$0xff] %vm231, %v1242
        %1307 = vst.msk [vmem:[#allocation3 + $0x180] sm:$0xff] %vm231, %v1243
        %1308 = vst.msk [vmem:[#allocation3 + $0x188] sm:$0xff] %vm231, %v1244
        %1309 = vst.msk [vmem:[#allocation3 + $0x190] sm:$0xff] %vm231, %v1245
        %1310 = vst.msk [vmem:[#allocation3 + $0x198] sm:$0xff] %vm231, %v1246
        %1311 = vst.msk [vmem:[#allocation3 + $0x1a0] sm:$0xff] %vm231, %v1247
        %1312 = vst.msk [vmem:[#allocation3 + $0x1a8] sm:$0xff] %vm231, %v1248
        %1313 = vst.msk [vmem:[#allocation3 + $0x1b0] sm:$0xff] %vm231, %v1249
        %1314 = vst.msk [vmem:[#allocation3 + $0x1b8] sm:$0xff] %vm231, %v1250
        %1315 = vst.msk [vmem:[#allocation3 + $0x1c0] sm:$0xff] %vm231, %v1251
        %1316 = vst.msk [vmem:[#allocation3 + $0x1c8] sm:$0xff] %vm231, %v1252
        %1317 = vst.msk [vmem:[#allocation3 + $0x1d0] sm:$0xff] %vm231, %v1253
        %1318 = vst.msk [vmem:[#allocation3 + $0x1d8] sm:$0xff] %vm231, %v1254
        %1319 = vst.msk [vmem:[#allocation3 + $0x1e0] sm:$0xff] %vm231, %v1255
        %1320 = vst.msk [vmem:[#allocation3 + $0x1e8] sm:$0xff] %vm231, %v1256
        %1321 = vst.msk [vmem:[#allocation3 + $0x1f0] sm:$0xff] %vm231, %v1257
        %1322 = vst.msk [vmem:[#allocation3 + $0x1f8] sm:$0xff] %vm231, %v1258
      $region40: #{tpu_custom_call.1} parent=35 // pred_fallthru
        _
      %v1323 = vld [vmem:[#allocation3] sm:$0xff]
      %v1324 = vld [vmem:[#allocation3 + $0x8] sm:$0xff]
      %v1325 = vld [vmem:[#allocation3 + $0x10] sm:$0xff]
      %v1326 = vld [vmem:[#allocation3 + $0x18] sm:$0xff]
      %v1327 = vld [vmem:[#allocation3 + $0x20] sm:$0xff]
      %v1328 = vld [vmem:[#allocation3 + $0x28] sm:$0xff]
      %v1329 = vld [vmem:[#allocation3 + $0x30] sm:$0xff]
      %v1330 = vld [vmem:[#allocation3 + $0x38] sm:$0xff]
      %v1331 = vld [vmem:[#allocation3 + $0x40] sm:$0xff]
      %v1332 = vld [vmem:[#allocation3 + $0x48] sm:$0xff]
      %v1333 = vld [vmem:[#allocation3 + $0x50] sm:$0xff]
      %v1334 = vld [vmem:[#allocation3 + $0x58] sm:$0xff]
      %v1335 = vld [vmem:[#allocation3 + $0x60] sm:$0xff]
      %v1336 = vld [vmem:[#allocation3 + $0x68] sm:$0xff]
      %v1337 = vld [vmem:[#allocation3 + $0x70] sm:$0xff]
      %v1338 = vld [vmem:[#allocation3 + $0x78] sm:$0xff]
      %v1339 = vld [vmem:[#allocation3 + $0x80] sm:$0xff]
      %v1340 = vld [vmem:[#allocation3 + $0x88] sm:$0xff]
      %v1341 = vld [vmem:[#allocation3 + $0x90] sm:$0xff]
      %v1342 = vld [vmem:[#allocation3 + $0x98] sm:$0xff]
      %v1343 = vld [vmem:[#allocation3 + $0xa0] sm:$0xff]
      %v1344 = vld [vmem:[#allocation3 + $0xa8] sm:$0xff]
      %v1345 = vld [vmem:[#allocation3 + $0xb0] sm:$0xff]
      %v1346 = vld [vmem:[#allocation3 + $0xb8] sm:$0xff]
      %v1347 = vld [vmem:[#allocation3 + $0xc0] sm:$0xff]
      %v1348 = vld [vmem:[#allocation3 + $0xc8] sm:$0xff]
      %v1349 = vld [vmem:[#allocation3 + $0xd0] sm:$0xff]
      %v1350 = vld [vmem:[#allocation3 + $0xd8] sm:$0xff]
      %v1351 = vld [vmem:[#allocation3 + $0xe0] sm:$0xff]
      %v1352 = vld [vmem:[#allocation3 + $0xe8] sm:$0xff]
      %v1353 = vld [vmem:[#allocation3 + $0xf0] sm:$0xff]
      %v1354 = vld [vmem:[#allocation3 + $0xf8] sm:$0xff]
      %v1355 = vld [vmem:[#allocation3 + $0x100] sm:$0xff]
      %v1356 = vld [vmem:[#allocation3 + $0x108] sm:$0xff]
      %v1357 = vld [vmem:[#allocation3 + $0x110] sm:$0xff]
      %v1358 = vld [vmem:[#allocation3 + $0x118] sm:$0xff]
      %v1359 = vld [vmem:[#allocation3 + $0x120] sm:$0xff]
      %v1360 = vld [vmem:[#allocation3 + $0x128] sm:$0xff]
      %v1361 = vld [vmem:[#allocation3 + $0x130] sm:$0xff]
      %v1362 = vld [vmem:[#allocation3 + $0x138] sm:$0xff]
      %v1363 = vld [vmem:[#allocation3 + $0x140] sm:$0xff]
      %v1364 = vld [vmem:[#allocation3 + $0x148] sm:$0xff]
      %v1365 = vld [vmem:[#allocation3 + $0x150] sm:$0xff]
      %v1366 = vld [vmem:[#allocation3 + $0x158] sm:$0xff]
      %v1367 = vld [vmem:[#allocation3 + $0x160] sm:$0xff]
      %v1368 = vld [vmem:[#allocation3 + $0x168] sm:$0xff]
      %v1369 = vld [vmem:[#allocation3 + $0x170] sm:$0xff]
      %v1370 = vld [vmem:[#allocation3 + $0x178] sm:$0xff]
      %v1371 = vld [vmem:[#allocation3 + $0x180] sm:$0xff]
      %v1372 = vld [vmem:[#allocation3 + $0x188] sm:$0xff]
      %v1373 = vld [vmem:[#allocation3 + $0x190] sm:$0xff]
      %v1374 = vld [vmem:[#allocation3 + $0x198] sm:$0xff]
      %v1375 = vld [vmem:[#allocation3 + $0x1a0] sm:$0xff]
      %v1376 = vld [vmem:[#allocation3 + $0x1a8] sm:$0xff]
      %v1377 = vld [vmem:[#allocation3 + $0x1b0] sm:$0xff]
      %v1378 = vld [vmem:[#allocation3 + $0x1b8] sm:$0xff]
      %v1379 = vld [vmem:[#allocation3 + $0x1c0] sm:$0xff]
      %v1380 = vld [vmem:[#allocation3 + $0x1c8] sm:$0xff]
      %v1381 = vld [vmem:[#allocation3 + $0x1d0] sm:$0xff]
      %v1382 = vld [vmem:[#allocation3 + $0x1d8] sm:$0xff]
      %v1383 = vld [vmem:[#allocation3 + $0x1e0] sm:$0xff]
      %v1384 = vld [vmem:[#allocation3 + $0x1e8] sm:$0xff]
      %v1385 = vld [vmem:[#allocation3 + $0x1f0] sm:$0xff]
      %v1386 = vld [vmem:[#allocation3 + $0x1f8] sm:$0xff]
      %v1387 = vld [vmem:[#allocation2] sm:$0xff]
      %v1388 = vld [vmem:[#allocation2 + $0x8] sm:$0xff]
      %v1389 = vld [vmem:[#allocation2 + $0x10] sm:$0xff]
      %v1390 = vld [vmem:[#allocation2 + $0x18] sm:$0xff]
      %v1391 = vld [vmem:[#allocation2 + $0x20] sm:$0xff]
      %v1392 = vld [vmem:[#allocation2 + $0x28] sm:$0xff]
      %v1393 = vld [vmem:[#allocation2 + $0x30] sm:$0xff]
      %v1394 = vld [vmem:[#allocation2 + $0x38] sm:$0xff]
      %v1395 = vld [vmem:[#allocation2 + $0x40] sm:$0xff]
      %v1396 = vld [vmem:[#allocation2 + $0x48] sm:$0xff]
      %v1397 = vld [vmem:[#allocation2 + $0x50] sm:$0xff]
      %v1398 = vld [vmem:[#allocation2 + $0x58] sm:$0xff]
      %v1399 = vld [vmem:[#allocation2 + $0x60] sm:$0xff]
      %v1400 = vld [vmem:[#allocation2 + $0x68] sm:$0xff]
      %v1401 = vld [vmem:[#allocation2 + $0x70] sm:$0xff]
      %v1402 = vld [vmem:[#allocation2 + $0x78] sm:$0xff]
      %v1403 = vld [vmem:[#allocation2 + $0x80] sm:$0xff]
      %v1404 = vld [vmem:[#allocation2 + $0x88] sm:$0xff]
      %v1405 = vld [vmem:[#allocation2 + $0x90] sm:$0xff]
      %v1406 = vld [vmem:[#allocation2 + $0x98] sm:$0xff]
      %v1407 = vld [vmem:[#allocation2 + $0xa0] sm:$0xff]
      %v1408 = vld [vmem:[#allocation2 + $0xa8] sm:$0xff]
      %v1409 = vld [vmem:[#allocation2 + $0xb0] sm:$0xff]
      %v1410 = vld [vmem:[#allocation2 + $0xb8] sm:$0xff]
      %v1411 = vld [vmem:[#allocation2 + $0xc0] sm:$0xff]
      %v1412 = vld [vmem:[#allocation2 + $0xc8] sm:$0xff]
      %v1413 = vld [vmem:[#allocation2 + $0xd0] sm:$0xff]
      %v1414 = vld [vmem:[#allocation2 + $0xd8] sm:$0xff]
      %v1415 = vld [vmem:[#allocation2 + $0xe0] sm:$0xff]
      %v1416 = vld [vmem:[#allocation2 + $0xe8] sm:$0xff]
      %v1417 = vld [vmem:[#allocation2 + $0xf0] sm:$0xff]
      %v1418 = vld [vmem:[#allocation2 + $0xf8] sm:$0xff]
      %v1419 = vld [vmem:[#allocation2 + $0x100] sm:$0xff]
      %v1420 = vld [vmem:[#allocation2 + $0x108] sm:$0xff]
      %v1421 = vld [vmem:[#allocation2 + $0x110] sm:$0xff]
      %v1422 = vld [vmem:[#allocation2 + $0x118] sm:$0xff]
      %v1423 = vld [vmem:[#allocation2 + $0x120] sm:$0xff]
      %v1424 = vld [vmem:[#allocation2 + $0x128] sm:$0xff]
      %v1425 = vld [vmem:[#allocation2 + $0x130] sm:$0xff]
      %v1426 = vld [vmem:[#allocation2 + $0x138] sm:$0xff]
      %v1427 = vld [vmem:[#allocation2 + $0x140] sm:$0xff]
      %v1428 = vld [vmem:[#allocation2 + $0x148] sm:$0xff]
      %v1429 = vld [vmem:[#allocation2 + $0x150] sm:$0xff]
      %v1430 = vld [vmem:[#allocation2 + $0x158] sm:$0xff]
      %v1431 = vld [vmem:[#allocation2 + $0x160] sm:$0xff]
      %v1432 = vld [vmem:[#allocation2 + $0x168] sm:$0xff]
      %v1433 = vld [vmem:[#allocation2 + $0x170] sm:$0xff]
      %v1434 = vld [vmem:[#allocation2 + $0x178] sm:$0xff]
      %v1435 = vld [vmem:[#allocation2 + $0x180] sm:$0xff]
      %v1436 = vld [vmem:[#allocation2 + $0x188] sm:$0xff]
      %v1437 = vld [vmem:[#allocation2 + $0x190] sm:$0xff]
      %v1438 = vld [vmem:[#allocation2 + $0x198] sm:$0xff]
      %v1439 = vld [vmem:[#allocation2 + $0x1a0] sm:$0xff]
      %v1440 = vld [vmem:[#allocation2 + $0x1a8] sm:$0xff]
      %v1441 = vld [vmem:[#allocation2 + $0x1b0] sm:$0xff]
      %v1442 = vld [vmem:[#allocation2 + $0x1b8] sm:$0xff]
      %v1443 = vld [vmem:[#allocation2 + $0x1c0] sm:$0xff]
      %v1444 = vld [vmem:[#allocation2 + $0x1c8] sm:$0xff]
      %v1445 = vld [vmem:[#allocation2 + $0x1d0] sm:$0xff]
      %v1446 = vld [vmem:[#allocation2 + $0x1d8] sm:$0xff]
      %v1447 = vld [vmem:[#allocation2 + $0x1e0] sm:$0xff]
      %v1448 = vld [vmem:[#allocation2 + $0x1e8] sm:$0xff]
      %v1449 = vld [vmem:[#allocation2 + $0x1f0] sm:$0xff]
      %v1450 = vld [vmem:[#allocation2 + $0x1f8] sm:$0xff]
      %v1451 = vadd.f32 %v1387, %v1323
      %v1452 = vadd.f32 %v1388, %v1324
      %v1453 = vadd.f32 %v1389, %v1325
      %v1454 = vadd.f32 %v1390, %v1326
      %v1455 = vadd.f32 %v1391, %v1327
      %v1456 = vadd.f32 %v1392, %v1328
      %v1457 = vadd.f32 %v1393, %v1329
      %v1458 = vadd.f32 %v1394, %v1330
      %v1459 = vadd.f32 %v1395, %v1331
      %v1460 = vadd.f32 %v1396, %v1332
      %v1461 = vadd.f32 %v1397, %v1333
      %v1462 = vadd.f32 %v1398, %v1334
      %v1463 = vadd.f32 %v1399, %v1335
      %v1464 = vadd.f32 %v1400, %v1336
      %v1465 = vadd.f32 %v1401, %v1337
      %v1466 = vadd.f32 %v1402, %v1338
      %v1467 = vadd.f32 %v1403, %v1339
      %v1468 = vadd.f32 %v1404, %v1340
      %v1469 = vadd.f32 %v1405, %v1341
      %v1470 = vadd.f32 %v1406, %v1342
      %v1471 = vadd.f32 %v1407, %v1343
      %v1472 = vadd.f32 %v1408, %v1344
      %v1473 = vadd.f32 %v1409, %v1345
      %v1474 = vadd.f32 %v1410, %v1346
      %v1475 = vadd.f32 %v1411, %v1347
      %v1476 = vadd.f32 %v1412, %v1348
      %v1477 = vadd.f32 %v1413, %v1349
      %v1478 = vadd.f32 %v1414, %v1350
      %v1479 = vadd.f32 %v1415, %v1351
      %v1480 = vadd.f32 %v1416, %v1352
      %v1481 = vadd.f32 %v1417, %v1353
      %v1482 = vadd.f32 %v1418, %v1354
      %v1483 = vadd.f32 %v1419, %v1355
      %v1484 = vadd.f32 %v1420, %v1356
      %v1485 = vadd.f32 %v1421, %v1357
      %v1486 = vadd.f32 %v1422, %v1358
      %v1487 = vadd.f32 %v1423, %v1359
      %v1488 = vadd.f32 %v1424, %v1360
      %v1489 = vadd.f32 %v1425, %v1361
      %v1490 = vadd.f32 %v1426, %v1362
      %v1491 = vadd.f32 %v1427, %v1363
      %v1492 = vadd.f32 %v1428, %v1364
      %v1493 = vadd.f32 %v1429, %v1365
      %v1494 = vadd.f32 %v1430, %v1366
      %v1495 = vadd.f32 %v1431, %v1367
      %v1496 = vadd.f32 %v1432, %v1368
      %v1497 = vadd.f32 %v1433, %v1369
      %v1498 = vadd.f32 %v1434, %v1370
      %v1499 = vadd.f32 %v1435, %v1371
      %v1500 = vadd.f32 %v1436, %v1372
      %v1501 = vadd.f32 %v1437, %v1373
      %v1502 = vadd.f32 %v1438, %v1374
      %v1503 = vadd.f32 %v1439, %v1375
      %v1504 = vadd.f32 %v1440, %v1376
      %v1505 = vadd.f32 %v1441, %v1377
      %v1506 = vadd.f32 %v1442, %v1378
      %v1507 = vadd.f32 %v1443, %v1379
      %v1508 = vadd.f32 %v1444, %v1380
      %v1509 = vadd.f32 %v1445, %v1381
      %v1510 = vadd.f32 %v1446, %v1382
      %v1511 = vadd.f32 %v1447, %v1383
      %v1512 = vadd.f32 %v1448, %v1384
      %v1513 = vadd.f32 %v1449, %v1385
      %v1514 = vadd.f32 %v1450, %v1386
      %vm1515 = vcmp.ge.f32.partialorder %v1451, 1.0
      %vm1516 = vcmp.ge.f32.partialorder %v1452, 1.0
      %vm1517 = vcmp.ge.f32.partialorder %v1453, 1.0
      %vm1518 = vcmp.ge.f32.partialorder %v1454, 1.0
      %vm1519 = vcmp.ge.f32.partialorder %v1455, 1.0
      %vm1520 = vcmp.ge.f32.partialorder %v1456, 1.0
      %vm1521 = vcmp.ge.f32.partialorder %v1457, 1.0
      %vm1522 = vcmp.ge.f32.partialorder %v1458, 1.0
      %vm1523 = vcmp.ge.f32.partialorder %v1459, 1.0
      %vm1524 = vcmp.ge.f32.partialorder %v1460, 1.0
      %vm1525 = vcmp.ge.f32.partialorder %v1461, 1.0
      %vm1526 = vcmp.ge.f32.partialorder %v1462, 1.0
      %vm1527 = vcmp.ge.f32.partialorder %v1463, 1.0
      %vm1528 = vcmp.ge.f32.partialorder %v1464, 1.0
      %vm1529 = vcmp.ge.f32.partialorder %v1465, 1.0
      %vm1530 = vcmp.ge.f32.partialorder %v1466, 1.0
      %vm1531 = vcmp.ge.f32.partialorder %v1467, 1.0
      %vm1532 = vcmp.ge.f32.partialorder %v1468, 1.0
      %vm1533 = vcmp.ge.f32.partialorder %v1469, 1.0
      %vm1534 = vcmp.ge.f32.partialorder %v1470, 1.0
      %vm1535 = vcmp.ge.f32.partialorder %v1471, 1.0
      %vm1536 = vcmp.ge.f32.partialorder %v1472, 1.0
      %vm1537 = vcmp.ge.f32.partialorder %v1473, 1.0
      %vm1538 = vcmp.ge.f32.partialorder %v1474, 1.0
      %vm1539 = vcmp.ge.f32.partialorder %v1475, 1.0
      %vm1540 = vcmp.ge.f32.partialorder %v1476, 1.0
      %vm1541 = vcmp.ge.f32.partialorder %v1477, 1.0
      %vm1542 = vcmp.ge.f32.partialorder %v1478, 1.0
      %vm1543 = vcmp.ge.f32.partialorder %v1479, 1.0
      %vm1544 = vcmp.ge.f32.partialorder %v1480, 1.0
      %vm1545 = vcmp.ge.f32.partialorder %v1481, 1.0
      %vm1546 = vcmp.ge.f32.partialorder %v1482, 1.0
      %vm1547 = vcmp.ge.f32.partialorder %v1483, 1.0
      %vm1548 = vcmp.ge.f32.partialorder %v1484, 1.0
      %vm1549 = vcmp.ge.f32.partialorder %v1485, 1.0
      %vm1550 = vcmp.ge.f32.partialorder %v1486, 1.0
      %vm1551 = vcmp.ge.f32.partialorder %v1487, 1.0
      %vm1552 = vcmp.ge.f32.partialorder %v1488, 1.0
      %vm1553 = vcmp.ge.f32.partialorder %v1489, 1.0
      %vm1554 = vcmp.ge.f32.partialorder %v1490, 1.0
      %vm1555 = vcmp.ge.f32.partialorder %v1491, 1.0
      %vm1556 = vcmp.ge.f32.partialorder %v1492, 1.0
      %vm1557 = vcmp.ge.f32.partialorder %v1493, 1.0
      %vm1558 = vcmp.ge.f32.partialorder %v1494, 1.0
      %vm1559 = vcmp.ge.f32.partialorder %v1495, 1.0
      %vm1560 = vcmp.ge.f32.partialorder %v1496, 1.0
      %vm1561 = vcmp.ge.f32.partialorder %v1497, 1.0
      %vm1562 = vcmp.ge.f32.partialorder %v1498, 1.0
      %vm1563 = vcmp.ge.f32.partialorder %v1499, 1.0
      %vm1564 = vcmp.ge.f32.partialorder %v1500, 1.0
      %vm1565 = vcmp.ge.f32.partialorder %v1501, 1.0
      %vm1566 = vcmp.ge.f32.partialorder %v1502, 1.0
      %vm1567 = vcmp.ge.f32.partialorder %v1503, 1.0
      %vm1568 = vcmp.ge.f32.partialorder %v1504, 1.0
      %vm1569 = vcmp.ge.f32.partialorder %v1505, 1.0
      %vm1570 = vcmp.ge.f32.partialorder %v1506, 1.0
      %vm1571 = vcmp.ge.f32.partialorder %v1507, 1.0
      %vm1572 = vcmp.ge.f32.partialorder %v1508, 1.0
      %vm1573 = vcmp.ge.f32.partialorder %v1509, 1.0
      %vm1574 = vcmp.ge.f32.partialorder %v1510, 1.0
      %vm1575 = vcmp.ge.f32.partialorder %v1511, 1.0
      %vm1576 = vcmp.ge.f32.partialorder %v1512, 1.0
      %vm1577 = vcmp.ge.f32.partialorder %v1513, 1.0
      %vm1578 = vcmp.ge.f32.partialorder %v1514, 1.0
      %v1579 = vsel %vm1515, 1, 0
      %v1580 = vsel %vm1516, 1, 0
      %v1581 = vsel %vm1517, 1, 0
      %v1582 = vsel %vm1518, 1, 0
      %v1583 = vsel %vm1519, 1, 0
      %v1584 = vsel %vm1520, 1, 0
      %v1585 = vsel %vm1521, 1, 0
      %v1586 = vsel %vm1522, 1, 0
      %v1587 = vsel %vm1523, 1, 0
      %v1588 = vsel %vm1524, 1, 0
      %v1589 = vsel %vm1525, 1, 0
      %v1590 = vsel %vm1526, 1, 0
      %v1591 = vsel %vm1527, 1, 0
      %v1592 = vsel %vm1528, 1, 0
      %v1593 = vsel %vm1529, 1, 0
      %v1594 = vsel %vm1530, 1, 0
      %v1595 = vsel %vm1531, 1, 0
      %v1596 = vsel %vm1532, 1, 0
      %v1597 = vsel %vm1533, 1, 0
      %v1598 = vsel %vm1534, 1, 0
      %v1599 = vsel %vm1535, 1, 0
      %v1600 = vsel %vm1536, 1, 0
      %v1601 = vsel %vm1537, 1, 0
      %v1602 = vsel %vm1538, 1, 0
      %v1603 = vsel %vm1539, 1, 0
      %v1604 = vsel %vm1540, 1, 0
      %v1605 = vsel %vm1541, 1, 0
      %v1606 = vsel %vm1542, 1, 0
      %v1607 = vsel %vm1543, 1, 0
      %v1608 = vsel %vm1544, 1, 0
      %v1609 = vsel %vm1545, 1, 0
      %v1610 = vsel %vm1546, 1, 0
      %v1611 = vsel %vm1547, 1, 0
      %v1612 = vsel %vm1548, 1, 0
      %v1613 = vsel %vm1549, 1, 0
      %v1614 = vsel %vm1550, 1, 0
      %v1615 = vsel %vm1551, 1, 0
      %v1616 = vsel %vm1552, 1, 0
      %v1617 = vsel %vm1553, 1, 0
      %v1618 = vsel %vm1554, 1, 0
      %v1619 = vsel %vm1555, 1, 0
      %v1620 = vsel %vm1556, 1, 0
      %v1621 = vsel %vm1557, 1, 0
      %v1622 = vsel %vm1558, 1, 0
      %v1623 = vsel %vm1559, 1, 0
      %v1624 = vsel %vm1560, 1, 0
      %v1625 = vsel %vm1561, 1, 0
      %v1626 = vsel %vm1562, 1, 0
      %v1627 = vsel %vm1563, 1, 0
      %v1628 = vsel %vm1564, 1, 0
      %v1629 = vsel %vm1565, 1, 0
      %v1630 = vsel %vm1566, 1, 0
      %v1631 = vsel %vm1567, 1, 0
      %v1632 = vsel %vm1568, 1, 0
      %v1633 = vsel %vm1569, 1, 0
      %v1634 = vsel %vm1570, 1, 0
      %v1635 = vsel %vm1571, 1, 0
      %v1636 = vsel %vm1572, 1, 0
      %v1637 = vsel %vm1573, 1, 0
      %v1638 = vsel %vm1574, 1, 0
      %v1639 = vsel %vm1575, 1, 0
      %v1640 = vsel %vm1576, 1, 0
      %v1641 = vsel %vm1577, 1, 0
      %v1642 = vsel %vm1578, 1, 0
      %v1643 = vcvt.s32.f32 %v1579
      %v1644 = vcvt.s32.f32 %v1580
      %v1645 = vcvt.s32.f32 %v1581
      %v1646 = vcvt.s32.f32 %v1582
      %v1647 = vcvt.s32.f32 %v1583
      %v1648 = vcvt.s32.f32 %v1584
      %v1649 = vcvt.s32.f32 %v1585
      %v1650 = vcvt.s32.f32 %v1586
      %v1651 = vcvt.s32.f32 %v1587
      %v1652 = vcvt.s32.f32 %v1588
      %v1653 = vcvt.s32.f32 %v1589
      %v1654 = vcvt.s32.f32 %v1590
      %v1655 = vcvt.s32.f32 %v1591
      %v1656 = vcvt.s32.f32 %v1592
      %v1657 = vcvt.s32.f32 %v1593
      %v1658 = vcvt.s32.f32 %v1594
      %v1659 = vcvt.s32.f32 %v1595
      %v1660 = vcvt.s32.f32 %v1596
      %v1661 = vcvt.s32.f32 %v1597
      %v1662 = vcvt.s32.f32 %v1598
      %v1663 = vcvt.s32.f32 %v1599
      %v1664 = vcvt.s32.f32 %v1600
      %v1665 = vcvt.s32.f32 %v1601
      %v1666 = vcvt.s32.f32 %v1602
      %v1667 = vcvt.s32.f32 %v1603
      %v1668 = vcvt.s32.f32 %v1604
      %v1669 = vcvt.s32.f32 %v1605
      %v1670 = vcvt.s32.f32 %v1606
      %v1671 = vcvt.s32.f32 %v1607
      %v1672 = vcvt.s32.f32 %v1608
      %v1673 = vcvt.s32.f32 %v1609
      %v1674 = vcvt.s32.f32 %v1610
      %v1675 = vcvt.s32.f32 %v1611
      %v1676 = vcvt.s32.f32 %v1612
      %v1677 = vcvt.s32.f32 %v1613
      %v1678 = vcvt.s32.f32 %v1614
      %v1679 = vcvt.s32.f32 %v1615
      %v1680 = vcvt.s32.f32 %v1616
      %v1681 = vcvt.s32.f32 %v1617
      %v1682 = vcvt.s32.f32 %v1618
      %v1683 = vcvt.s32.f32 %v1619
      %v1684 = vcvt.s32.f32 %v1620
      %v1685 = vcvt.s32.f32 %v1621
      %v1686 = vcvt.s32.f32 %v1622
      %v1687 = vcvt.s32.f32 %v1623
      %v1688 = vcvt.s32.f32 %v1624
      %v1689 = vcvt.s32.f32 %v1625
      %v1690 = vcvt.s32.f32 %v1626
      %v1691 = vcvt.s32.f32 %v1627
      %v1692 = vcvt.s32.f32 %v1628
      %v1693 = vcvt.s32.f32 %v1629
      %v1694 = vcvt.s32.f32 %v1630
      %v1695 = vcvt.s32.f32 %v1631
      %v1696 = vcvt.s32.f32 %v1632
      %v1697 = vcvt.s32.f32 %v1633
      %v1698 = vcvt.s32.f32 %v1634
      %v1699 = vcvt.s32.f32 %v1635
      %v1700 = vcvt.s32.f32 %v1636
      %v1701 = vcvt.s32.f32 %v1637
      %v1702 = vcvt.s32.f32 %v1638
      %v1703 = vcvt.s32.f32 %v1639
      %v1704 = vcvt.s32.f32 %v1640
      %v1705 = vcvt.s32.f32 %v1641
      %v1706 = vcvt.s32.f32 %v1642
      %v1707 = vsub.f32 1.0, %v1643
      %v1708 = vsub.f32 1.0, %v1644
      %v1709 = vsub.f32 1.0, %v1645
      %v1710 = vsub.f32 1.0, %v1646
      %v1711 = vsub.f32 1.0, %v1647
      %v1712 = vsub.f32 1.0, %v1648
      %v1713 = vsub.f32 1.0, %v1649
      %v1714 = vsub.f32 1.0, %v1650
      %v1715 = vsub.f32 1.0, %v1651
      %v1716 = vsub.f32 1.0, %v1652
      %v1717 = vsub.f32 1.0, %v1653
      %v1718 = vsub.f32 1.0, %v1654
      %v1719 = vsub.f32 1.0, %v1655
      %v1720 = vsub.f32 1.0, %v1656
      %v1721 = vsub.f32 1.0, %v1657
      %v1722 = vsub.f32 1.0, %v1658
      %v1723 = vsub.f32 1.0, %v1659
      %v1724 = vsub.f32 1.0, %v1660
      %v1725 = vsub.f32 1.0, %v1661
      %v1726 = vsub.f32 1.0, %v1662
      %v1727 = vsub.f32 1.0, %v1663
      %v1728 = vsub.f32 1.0, %v1664
      %v1729 = vsub.f32 1.0, %v1665
      %v1730 = vsub.f32 1.0, %v1666
      %v1731 = vsub.f32 1.0, %v1667
      %v1732 = vsub.f32 1.0, %v1668
      %v1733 = vsub.f32 1.0, %v1669
      %v1734 = vsub.f32 1.0, %v1670
      %v1735 = vsub.f32 1.0, %v1671
      %v1736 = vsub.f32 1.0, %v1672
      %v1737 = vsub.f32 1.0, %v1673
      %v1738 = vsub.f32 1.0, %v1674
      %v1739 = vsub.f32 1.0, %v1675
      %v1740 = vsub.f32 1.0, %v1676
      %v1741 = vsub.f32 1.0, %v1677
      %v1742 = vsub.f32 1.0, %v1678
      %v1743 = vsub.f32 1.0, %v1679
      %v1744 = vsub.f32 1.0, %v1680
      %v1745 = vsub.f32 1.0, %v1681
      %v1746 = vsub.f32 1.0, %v1682
      %v1747 = vsub.f32 1.0, %v1683
      %v1748 = vsub.f32 1.0, %v1684
      %v1749 = vsub.f32 1.0, %v1685
      %v1750 = vsub.f32 1.0, %v1686
      %v1751 = vsub.f32 1.0, %v1687
      %v1752 = vsub.f32 1.0, %v1688
      %v1753 = vsub.f32 1.0, %v1689
      %v1754 = vsub.f32 1.0, %v1690
      %v1755 = vsub.f32 1.0, %v1691
      %v1756 = vsub.f32 1.0, %v1692
      %v1757 = vsub.f32 1.0, %v1693
      %v1758 = vsub.f32 1.0, %v1694
      %v1759 = vsub.f32 1.0, %v1695
      %v1760 = vsub.f32 1.0, %v1696
      %v1761 = vsub.f32 1.0, %v1697
      %v1762 = vsub.f32 1.0, %v1698
      %v1763 = vsub.f32 1.0, %v1699
      %v1764 = vsub.f32 1.0, %v1700
      %v1765 = vsub.f32 1.0, %v1701
      %v1766 = vsub.f32 1.0, %v1702
      %v1767 = vsub.f32 1.0, %v1703
      %v1768 = vsub.f32 1.0, %v1704
      %v1769 = vsub.f32 1.0, %v1705
      %v1770 = vsub.f32 1.0, %v1706
      %v1771 = vmul.f32 %v1451, %v1707
      %v1772 = vmul.f32 %v1452, %v1708
      %v1773 = vmul.f32 %v1453, %v1709
      %v1774 = vmul.f32 %v1454, %v1710
      %v1775 = vmul.f32 %v1455, %v1711
      %v1776 = vmul.f32 %v1456, %v1712
      %v1777 = vmul.f32 %v1457, %v1713
      %v1778 = vmul.f32 %v1458, %v1714
      %v1779 = vmul.f32 %v1459, %v1715
      %v1780 = vmul.f32 %v1460, %v1716
      %v1781 = vmul.f32 %v1461, %v1717
      %v1782 = vmul.f32 %v1462, %v1718
      %v1783 = vmul.f32 %v1463, %v1719
      %v1784 = vmul.f32 %v1464, %v1720
      %v1785 = vmul.f32 %v1465, %v1721
      %v1786 = vmul.f32 %v1466, %v1722
      %v1787 = vmul.f32 %v1467, %v1723
      %v1788 = vmul.f32 %v1468, %v1724
      %v1789 = vmul.f32 %v1469, %v1725
      %v1790 = vmul.f32 %v1470, %v1726
      %v1791 = vmul.f32 %v1471, %v1727
      %v1792 = vmul.f32 %v1472, %v1728
      %v1793 = vmul.f32 %v1473, %v1729
      %v1794 = vmul.f32 %v1474, %v1730
      %v1795 = vmul.f32 %v1475, %v1731
      %v1796 = vmul.f32 %v1476, %v1732
      %v1797 = vmul.f32 %v1477, %v1733
      %v1798 = vmul.f32 %v1478, %v1734
      %v1799 = vmul.f32 %v1479, %v1735
      %v1800 = vmul.f32 %v1480, %v1736
      %v1801 = vmul.f32 %v1481, %v1737
      %v1802 = vmul.f32 %v1482, %v1738
      %v1803 = vmul.f32 %v1483, %v1739
      %v1804 = vmul.f32 %v1484, %v1740
      %v1805 = vmul.f32 %v1485, %v1741
      %v1806 = vmul.f32 %v1486, %v1742
      %v1807 = vmul.f32 %v1487, %v1743
      %v1808 = vmul.f32 %v1488, %v1744
      %v1809 = vmul.f32 %v1489, %v1745
      %v1810 = vmul.f32 %v1490, %v1746
      %v1811 = vmul.f32 %v1491, %v1747
      %v1812 = vmul.f32 %v1492, %v1748
      %v1813 = vmul.f32 %v1493, %v1749
      %v1814 = vmul.f32 %v1494, %v1750
      %v1815 = vmul.f32 %v1495, %v1751
      %v1816 = vmul.f32 %v1496, %v1752
      %v1817 = vmul.f32 %v1497, %v1753
      %v1818 = vmul.f32 %v1498, %v1754
      %v1819 = vmul.f32 %v1499, %v1755
      %v1820 = vmul.f32 %v1500, %v1756
      %v1821 = vmul.f32 %v1501, %v1757
      %v1822 = vmul.f32 %v1502, %v1758
      %v1823 = vmul.f32 %v1503, %v1759
      %v1824 = vmul.f32 %v1504, %v1760
      %v1825 = vmul.f32 %v1505, %v1761
      %v1826 = vmul.f32 %v1506, %v1762
      %v1827 = vmul.f32 %v1507, %v1763
      %v1828 = vmul.f32 %v1508, %v1764
      %v1829 = vmul.f32 %v1509, %v1765
      %v1830 = vmul.f32 %v1510, %v1766
      %v1831 = vmul.f32 %v1511, %v1767
      %v1832 = vmul.f32 %v1512, %v1768
      %v1833 = vmul.f32 %v1513, %v1769
      %v1834 = vmul.f32 %v1514, %v1770
      %vm1835 = vcmask 523264
      %1836 = vst.msk [vmem:[#allocation2] sm:$0xff] %vm1835, %v1771
      %1837 = vst.msk [vmem:[#allocation2 + $0x8] sm:$0xff] %vm1835, %v1772
      %1838 = vst.msk [vmem:[#allocation2 + $0x10] sm:$0xff] %vm1835, %v1773
      %1839 = vst.msk [vmem:[#allocation2 + $0x18] sm:$0xff] %vm1835, %v1774
      %1840 = vst.msk [vmem:[#allocation2 + $0x20] sm:$0xff] %vm1835, %v1775
      %1841 = vst.msk [vmem:[#allocation2 + $0x28] sm:$0xff] %vm1835, %v1776
      %1842 = vst.msk [vmem:[#allocation2 + $0x30] sm:$0xff] %vm1835, %v1777
      %1843 = vst.msk [vmem:[#allocation2 + $0x38] sm:$0xff] %vm1835, %v1778
      %1844 = vst.msk [vmem:[#allocation2 + $0x40] sm:$0xff] %vm1835, %v1779
      %1845 = vst.msk [vmem:[#allocation2 + $0x48] sm:$0xff] %vm1835, %v1780
      %1846 = vst.msk [vmem:[#allocation2 + $0x50] sm:$0xff] %vm1835, %v1781
      %1847 = vst.msk [vmem:[#allocation2 + $0x58] sm:$0xff] %vm1835, %v1782
      %1848 = vst.msk [vmem:[#allocation2 + $0x60] sm:$0xff] %vm1835, %v1783
      %1849 = vst.msk [vmem:[#allocation2 + $0x68] sm:$0xff] %vm1835, %v1784
      %1850 = vst.msk [vmem:[#allocation2 + $0x70] sm:$0xff] %vm1835, %v1785
      %1851 = vst.msk [vmem:[#allocation2 + $0x78] sm:$0xff] %vm1835, %v1786
      %1852 = vst.msk [vmem:[#allocation2 + $0x80] sm:$0xff] %vm1835, %v1787
      %1853 = vst.msk [vmem:[#allocation2 + $0x88] sm:$0xff] %vm1835, %v1788
      %1854 = vst.msk [vmem:[#allocation2 + $0x90] sm:$0xff] %vm1835, %v1789
      %1855 = vst.msk [vmem:[#allocation2 + $0x98] sm:$0xff] %vm1835, %v1790
      %1856 = vst.msk [vmem:[#allocation2 + $0xa0] sm:$0xff] %vm1835, %v1791
      %1857 = vst.msk [vmem:[#allocation2 + $0xa8] sm:$0xff] %vm1835, %v1792
      %1858 = vst.msk [vmem:[#allocation2 + $0xb0] sm:$0xff] %vm1835, %v1793
      %1859 = vst.msk [vmem:[#allocation2 + $0xb8] sm:$0xff] %vm1835, %v1794
      %1860 = vst.msk [vmem:[#allocation2 + $0xc0] sm:$0xff] %vm1835, %v1795
      %1861 = vst.msk [vmem:[#allocation2 + $0xc8] sm:$0xff] %vm1835, %v1796
      %1862 = vst.msk [vmem:[#allocation2 + $0xd0] sm:$0xff] %vm1835, %v1797
      %1863 = vst.msk [vmem:[#allocation2 + $0xd8] sm:$0xff] %vm1835, %v1798
      %1864 = vst.msk [vmem:[#allocation2 + $0xe0] sm:$0xff] %vm1835, %v1799
      %1865 = vst.msk [vmem:[#allocation2 + $0xe8] sm:$0xff] %vm1835, %v1800
      %1866 = vst.msk [vmem:[#allocation2 + $0xf0] sm:$0xff] %vm1835, %v1801
      %1867 = vst.msk [vmem:[#allocation2 + $0xf8] sm:$0xff] %vm1835, %v1802
      %1868 = vst.msk [vmem:[#allocation2 + $0x100] sm:$0xff] %vm1835, %v1803
      %1869 = vst.msk [vmem:[#allocation2 + $0x108] sm:$0xff] %vm1835, %v1804
      %1870 = vst.msk [vmem:[#allocation2 + $0x110] sm:$0xff] %vm1835, %v1805
      %1871 = vst.msk [vmem:[#allocation2 + $0x118] sm:$0xff] %vm1835, %v1806
      %1872 = vst.msk [vmem:[#allocation2 + $0x120] sm:$0xff] %vm1835, %v1807
      %1873 = vst.msk [vmem:[#allocation2 + $0x128] sm:$0xff] %vm1835, %v1808
      %1874 = vst.msk [vmem:[#allocation2 + $0x130] sm:$0xff] %vm1835, %v1809
      %1875 = vst.msk [vmem:[#allocation2 + $0x138] sm:$0xff] %vm1835, %v1810
      %1876 = vst.msk [vmem:[#allocation2 + $0x140] sm:$0xff] %vm1835, %v1811
      %1877 = vst.msk [vmem:[#allocation2 + $0x148] sm:$0xff] %vm1835, %v1812
      %1878 = vst.msk [vmem:[#allocation2 + $0x150] sm:$0xff] %vm1835, %v1813
      %1879 = vst.msk [vmem:[#allocation2 + $0x158] sm:$0xff] %vm1835, %v1814
      %1880 = vst.msk [vmem:[#allocation2 + $0x160] sm:$0xff] %vm1835, %v1815
      %1881 = vst.msk [vmem:[#allocation2 + $0x168] sm:$0xff] %vm1835, %v1816
      %1882 = vst.msk [vmem:[#allocation2 + $0x170] sm:$0xff] %vm1835, %v1817
      %1883 = vst.msk [vmem:[#allocation2 + $0x178] sm:$0xff] %vm1835, %v1818
      %1884 = vst.msk [vmem:[#allocation2 + $0x180] sm:$0xff] %vm1835, %v1819
      %1885 = vst.msk [vmem:[#allocation2 + $0x188] sm:$0xff] %vm1835, %v1820
      %1886 = vst.msk [vmem:[#allocation2 + $0x190] sm:$0xff] %vm1835, %v1821
      %1887 = vst.msk [vmem:[#allocation2 + $0x198] sm:$0xff] %vm1835, %v1822
      %1888 = vst.msk [vmem:[#allocation2 + $0x1a0] sm:$0xff] %vm1835, %v1823
      %1889 = vst.msk [vmem:[#allocation2 + $0x1a8] sm:$0xff] %vm1835, %v1824
      %1890 = vst.msk [vmem:[#allocation2 + $0x1b0] sm:$0xff] %vm1835, %v1825
      %1891 = vst.msk [vmem:[#allocation2 + $0x1b8] sm:$0xff] %vm1835, %v1826
      %1892 = vst.msk [vmem:[#allocation2 + $0x1c0] sm:$0xff] %vm1835, %v1827
      %1893 = vst.msk [vmem:[#allocation2 + $0x1c8] sm:$0xff] %vm1835, %v1828
      %1894 = vst.msk [vmem:[#allocation2 + $0x1d0] sm:$0xff] %vm1835, %v1829
      %1895 = vst.msk [vmem:[#allocation2 + $0x1d8] sm:$0xff] %vm1835, %v1830
      %1896 = vst.msk [vmem:[#allocation2 + $0x1e0] sm:$0xff] %vm1835, %v1831
      %1897 = vst.msk [vmem:[#allocation2 + $0x1e8] sm:$0xff] %vm1835, %v1832
      %1898 = vst.msk [vmem:[#allocation2 + $0x1f0] sm:$0xff] %vm1835, %v1833
      %1899 = vst.msk [vmem:[#allocation2 + $0x1f8] sm:$0xff] %vm1835, %v1834
      %v1900 = vpack.c.bf16 %v1644, %v1643
      %v1901 = vpack.c.bf16 %v1646, %v1645
      %v1902 = vpack.c.bf16 %v1648, %v1647
      %v1903 = vpack.c.bf16 %v1650, %v1649
      %v1904 = vpack.c.bf16 %v1652, %v1651
      %v1905 = vpack.c.bf16 %v1654, %v1653
      %v1906 = vpack.c.bf16 %v1656, %v1655
      %v1907 = vpack.c.bf16 %v1658, %v1657
      %v1908 = vpack.c.bf16 %v1660, %v1659
      %v1909 = vpack.c.bf16 %v1662, %v1661
      %v1910 = vpack.c.bf16 %v1664, %v1663
      %v1911 = vpack.c.bf16 %v1666, %v1665
      %v1912 = vpack.c.bf16 %v1668, %v1667
      %v1913 = vpack.c.bf16 %v1670, %v1669
      %v1914 = vpack.c.bf16 %v1672, %v1671
      %v1915 = vpack.c.bf16 %v1674, %v1673
      %v1916 = vpack.c.bf16 %v1676, %v1675
      %v1917 = vpack.c.bf16 %v1678, %v1677
      %v1918 = vpack.c.bf16 %v1680, %v1679
      %v1919 = vpack.c.bf16 %v1682, %v1681
      %v1920 = vpack.c.bf16 %v1684, %v1683
      %v1921 = vpack.c.bf16 %v1686, %v1685
      %v1922 = vpack.c.bf16 %v1688, %v1687
      %v1923 = vpack.c.bf16 %v1690, %v1689
      %v1924 = vpack.c.bf16 %v1692, %v1691
      %v1925 = vpack.c.bf16 %v1694, %v1693
      %v1926 = vpack.c.bf16 %v1696, %v1695
      %v1927 = vpack.c.bf16 %v1698, %v1697
      %v1928 = vpack.c.bf16 %v1700, %v1699
      %v1929 = vpack.c.bf16 %v1702, %v1701
      %v1930 = vpack.c.bf16 %v1704, %v1703
      %v1931 = vpack.c.bf16 %v1706, %v1705
      %v1964 = vunpack.c.l.b16 %v1900
      %v1965 = vunpack.c.h.b16 %v1900
      %v1966 = vunpack.c.l.b16 %v1901
      %v1967 = vunpack.c.h.b16 %v1901
      %v1968 = vunpack.c.l.b16 %v1902
      %v1969 = vunpack.c.h.b16 %v1902
      %v1970 = vunpack.c.l.b16 %v1903
      %v1971 = vunpack.c.h.b16 %v1903
      %v1972 = vunpack.c.l.b16 %v1904
      %v1973 = vunpack.c.h.b16 %v1904
      %v1974 = vunpack.c.l.b16 %v1905
      %v1975 = vunpack.c.h.b16 %v1905
      %v1976 = vunpack.c.l.b16 %v1906
      %v1977 = vunpack.c.h.b16 %v1906
      %v1978 = vunpack.c.l.b16 %v1907
      %v1979 = vunpack.c.h.b16 %v1907
      %v1980 = vunpack.c.l.b16 %v1908
      %v1981 = vunpack.c.h.b16 %v1908
      %v1982 = vunpack.c.l.b16 %v1909
      %v1983 = vunpack.c.h.b16 %v1909
      %v1984 = vunpack.c.l.b16 %v1910
      %v1985 = vunpack.c.h.b16 %v1910
      %v1986 = vunpack.c.l.b16 %v1911
      %v1987 = vunpack.c.h.b16 %v1911
      %v1988 = vunpack.c.l.b16 %v1912
      %v1989 = vunpack.c.h.b16 %v1912
      %v1990 = vunpack.c.l.b16 %v1913
      %v1991 = vunpack.c.h.b16 %v1913
      %v1992 = vunpack.c.l.b16 %v1914
      %v1993 = vunpack.c.h.b16 %v1914
      %v1994 = vunpack.c.l.b16 %v1915
      %v1995 = vunpack.c.h.b16 %v1915
      %v1996 = vunpack.c.l.b16 %v1916
      %v1997 = vunpack.c.h.b16 %v1916
      %v1998 = vunpack.c.l.b16 %v1917
      %v1999 = vunpack.c.h.b16 %v1917
      %v2000 = vunpack.c.l.b16 %v1918
      %v2001 = vunpack.c.h.b16 %v1918
      %v2002 = vunpack.c.l.b16 %v1919
      %v2003 = vunpack.c.h.b16 %v1919
      %v2004 = vunpack.c.l.b16 %v1920
      %v2005 = vunpack.c.h.b16 %v1920
      %v2006 = vunpack.c.l.b16 %v1921
      %v2007 = vunpack.c.h.b16 %v1921
      %v2008 = vunpack.c.l.b16 %v1922
      %v2009 = vunpack.c.h.b16 %v1922
      %v2010 = vunpack.c.l.b16 %v1923
      %v2011 = vunpack.c.h.b16 %v1923
      %v2012 = vunpack.c.l.b16 %v1924
      %v2013 = vunpack.c.h.b16 %v1924
      %v2014 = vunpack.c.l.b16 %v1925
      %v2015 = vunpack.c.h.b16 %v1925
      %v2016 = vunpack.c.l.b16 %v1926
      %v2017 = vunpack.c.h.b16 %v1926
      %v2018 = vunpack.c.l.b16 %v1927
      %v2019 = vunpack.c.h.b16 %v1927
      %v2020 = vunpack.c.l.b16 %v1928
      %v2021 = vunpack.c.h.b16 %v1928
      %v2022 = vunpack.c.l.b16 %v1929
      %v2023 = vunpack.c.h.b16 %v1929
      %v2024 = vunpack.c.l.b16 %v1930
      %v2025 = vunpack.c.h.b16 %v1930
      %v2026 = vunpack.c.l.b16 %v1931
      %v2027 = vunpack.c.h.b16 %v1931
      %v2028 = vpack.c.b16 %v1964, %v1964
      %v2029 = vpack.c.b16 %v1965, %v1965
      %v2030 = vpack.c.b16 %v1966, %v1966
      %v2031 = vpack.c.b16 %v1967, %v1967
      %v2032 = vpack.c.b16 %v1968, %v1968
      %v2033 = vpack.c.b16 %v1969, %v1969
      %v2034 = vpack.c.b16 %v1970, %v1970
      %v2035 = vpack.c.b16 %v1971, %v1971
      %v2036 = vpack.c.b16 %v1972, %v1972
      %v2037 = vpack.c.b16 %v1973, %v1973
      %v2038 = vpack.c.b16 %v1974, %v1974
      %v2039 = vpack.c.b16 %v1975, %v1975
      %v2040 = vpack.c.b16 %v1976, %v1976
      %v2041 = vpack.c.b16 %v1977, %v1977
      %v2042 = vpack.c.b16 %v1978, %v1978
      %v2043 = vpack.c.b16 %v1979, %v1979
      %v2044 = vpack.c.b16 %v1980, %v1980
      %v2045 = vpack.c.b16 %v1981, %v1981
      %v2046 = vpack.c.b16 %v1982, %v1982
      %v2047 = vpack.c.b16 %v1983, %v1983
      %v2048 = vpack.c.b16 %v1984, %v1984
      %v2049 = vpack.c.b16 %v1985, %v1985
      %v2050 = vpack.c.b16 %v1986, %v1986
      %v2051 = vpack.c.b16 %v1987, %v1987
      %v2052 = vpack.c.b16 %v1988, %v1988
      %v2053 = vpack.c.b16 %v1989, %v1989
      %v2054 = vpack.c.b16 %v1990, %v1990
      %v2055 = vpack.c.b16 %v1991, %v1991
      %v2056 = vpack.c.b16 %v1992, %v1992
      %v2057 = vpack.c.b16 %v1993, %v1993
      %v2058 = vpack.c.b16 %v1994, %v1994
      %v2059 = vpack.c.b16 %v1995, %v1995
      %v2060 = vpack.c.b16 %v1996, %v1996
      %v2061 = vpack.c.b16 %v1997, %v1997
      %v2062 = vpack.c.b16 %v1998, %v1998
      %v2063 = vpack.c.b16 %v1999, %v1999
      %v2064 = vpack.c.b16 %v2000, %v2000
      %v2065 = vpack.c.b16 %v2001, %v2001
      %v2066 = vpack.c.b16 %v2002, %v2002
      %v2067 = vpack.c.b16 %v2003, %v2003
      %v2068 = vpack.c.b16 %v2004, %v2004
      %v2069 = vpack.c.b16 %v2005, %v2005
      %v2070 = vpack.c.b16 %v2006, %v2006
      %v2071 = vpack.c.b16 %v2007, %v2007
      %v2072 = vpack.c.b16 %v2008, %v2008
      %v2073 = vpack.c.b16 %v2009, %v2009
      %v2074 = vpack.c.b16 %v2010, %v2010
      %v2075 = vpack.c.b16 %v2011, %v2011
      %v2076 = vpack.c.b16 %v2012, %v2012
      %v2077 = vpack.c.b16 %v2013, %v2013
      %v2078 = vpack.c.b16 %v2014, %v2014
      %v2079 = vpack.c.b16 %v2015, %v2015
      %v2080 = vpack.c.b16 %v2016, %v2016
      %v2081 = vpack.c.b16 %v2017, %v2017
      %v2082 = vpack.c.b16 %v2018, %v2018
      %v2083 = vpack.c.b16 %v2019, %v2019
      %v2084 = vpack.c.b16 %v2020, %v2020
      %v2085 = vpack.c.b16 %v2021, %v2021
      %v2086 = vpack.c.b16 %v2022, %v2022
      %v2087 = vpack.c.b16 %v2023, %v2023
      %v2088 = vpack.c.b16 %v2024, %v2024
      %v2089 = vpack.c.b16 %v2025, %v2025
      %v2090 = vpack.c.b16 %v2026, %v2026
      %v2091 = vpack.c.b16 %v2027, %v2027
      %vm2156 = vcmask 519168
      %2157 = vst.msk [vmem:[%s224] sm:$0xf] %vm2156, %v2028
      %2158 = vst.msk [vmem:[%s224 + $0x4] sm:$0xf] %vm2156, %v2029
      %2159 = vst.msk [vmem:[%s224 + $0x8] sm:$0xf] %vm2156, %v2030
      %2160 = vst.msk [vmem:[%s224 + $0xc] sm:$0xf] %vm2156, %v2031
      %2161 = vst.msk [vmem:[%s224 + $0x10] sm:$0xf] %vm2156, %v2032
      %2162 = vst.msk [vmem:[%s224 + $0x14] sm:$0xf] %vm2156, %v2033
      %2163 = vst.msk [vmem:[%s224 + $0x18] sm:$0xf] %vm2156, %v2034
      %2164 = vst.msk [vmem:[%s224 + $0x1c] sm:$0xf] %vm2156, %v2035
      %2165 = vst.msk [vmem:[%s224 + $0x20] sm:$0xf] %vm2156, %v2036
      %2166 = vst.msk [vmem:[%s224 + $0x24] sm:$0xf] %vm2156, %v2037
      %2167 = vst.msk [vmem:[%s224 + $0x28] sm:$0xf] %vm2156, %v2038
      %2168 = vst.msk [vmem:[%s224 + $0x2c] sm:$0xf] %vm2156, %v2039
      %2169 = vst.msk [vmem:[%s224 + $0x30] sm:$0xf] %vm2156, %v2040
      %2170 = vst.msk [vmem:[%s224 + $0x34] sm:$0xf] %vm2156, %v2041
      %2171 = vst.msk [vmem:[%s224 + $0x38] sm:$0xf] %vm2156, %v2042
      %2172 = vst.msk [vmem:[%s224 + $0x3c] sm:$0xf] %vm2156, %v2043
      %2173 = vst.msk [vmem:[%s224 + $0x40] sm:$0xf] %vm2156, %v2044
      %2174 = vst.msk [vmem:[%s224 + $0x44] sm:$0xf] %vm2156, %v2045
      %2175 = vst.msk [vmem:[%s224 + $0x48] sm:$0xf] %vm2156, %v2046
      %2176 = vst.msk [vmem:[%s224 + $0x4c] sm:$0xf] %vm2156, %v2047
      %2177 = vst.msk [vmem:[%s224 + $0x50] sm:$0xf] %vm2156, %v2048
      %2178 = vst.msk [vmem:[%s224 + $0x54] sm:$0xf] %vm2156, %v2049
      %2179 = vst.msk [vmem:[%s224 + $0x58] sm:$0xf] %vm2156, %v2050
      %2180 = vst.msk [vmem:[%s224 + $0x5c] sm:$0xf] %vm2156, %v2051
      %2181 = vst.msk [vmem:[%s224 + $0x60] sm:$0xf] %vm2156, %v2052
      %2182 = vst.msk [vmem:[%s224 + $0x64] sm:$0xf] %vm2156, %v2053
      %2183 = vst.msk [vmem:[%s224 + $0x68] sm:$0xf] %vm2156, %v2054
      %2184 = vst.msk [vmem:[%s224 + $0x6c] sm:$0xf] %vm2156, %v2055
      %2185 = vst.msk [vmem:[%s224 + $0x70] sm:$0xf] %vm2156, %v2056
      %2186 = vst.msk [vmem:[%s224 + $0x74] sm:$0xf] %vm2156, %v2057
      %2187 = vst.msk [vmem:[%s224 + $0x78] sm:$0xf] %vm2156, %v2058
      %2188 = vst.msk [vmem:[%s224 + $0x7c] sm:$0xf] %vm2156, %v2059
      %2189 = vst.msk [vmem:[%s224 + $0x80] sm:$0xf] %vm2156, %v2060
      %2190 = vst.msk [vmem:[%s224 + $0x84] sm:$0xf] %vm2156, %v2061
      %2191 = vst.msk [vmem:[%s224 + $0x88] sm:$0xf] %vm2156, %v2062
      %2192 = vst.msk [vmem:[%s224 + $0x8c] sm:$0xf] %vm2156, %v2063
      %2193 = vst.msk [vmem:[%s224 + $0x90] sm:$0xf] %vm2156, %v2064
      %2194 = vst.msk [vmem:[%s224 + $0x94] sm:$0xf] %vm2156, %v2065
      %2195 = vst.msk [vmem:[%s224 + $0x98] sm:$0xf] %vm2156, %v2066
      %2196 = vst.msk [vmem:[%s224 + $0x9c] sm:$0xf] %vm2156, %v2067
      %2197 = vst.msk [vmem:[%s224 + $0xa0] sm:$0xf] %vm2156, %v2068
      %2198 = vst.msk [vmem:[%s224 + $0xa4] sm:$0xf] %vm2156, %v2069
      %2199 = vst.msk [vmem:[%s224 + $0xa8] sm:$0xf] %vm2156, %v2070
      %2200 = vst.msk [vmem:[%s224 + $0xac] sm:$0xf] %vm2156, %v2071
      %2201 = vst.msk [vmem:[%s224 + $0xb0] sm:$0xf] %vm2156, %v2072
      %2202 = vst.msk [vmem:[%s224 + $0xb4] sm:$0xf] %vm2156, %v2073
      %2203 = vst.msk [vmem:[%s224 + $0xb8] sm:$0xf] %vm2156, %v2074
      %2204 = vst.msk [vmem:[%s224 + $0xbc] sm:$0xf] %vm2156, %v2075
      %2205 = vst.msk [vmem:[%s224 + $0xc0] sm:$0xf] %vm2156, %v2076
      %2206 = vst.msk [vmem:[%s224 + $0xc4] sm:$0xf] %vm2156, %v2077
      %2207 = vst.msk [vmem:[%s224 + $0xc8] sm:$0xf] %vm2156, %v2078
      %2208 = vst.msk [vmem:[%s224 + $0xcc] sm:$0xf] %vm2156, %v2079
      %2209 = vst.msk [vmem:[%s224 + $0xd0] sm:$0xf] %vm2156, %v2080
      %2210 = vst.msk [vmem:[%s224 + $0xd4] sm:$0xf] %vm2156, %v2081
      %2211 = vst.msk [vmem:[%s224 + $0xd8] sm:$0xf] %vm2156, %v2082
      %2212 = vst.msk [vmem:[%s224 + $0xdc] sm:$0xf] %vm2156, %v2083
      %2213 = vst.msk [vmem:[%s224 + $0xe0] sm:$0xf] %vm2156, %v2084
      %2214 = vst.msk [vmem:[%s224 + $0xe4] sm:$0xf] %vm2156, %v2085
      %2215 = vst.msk [vmem:[%s224 + $0xe8] sm:$0xf] %vm2156, %v2086
      %2216 = vst.msk [vmem:[%s224 + $0xec] sm:$0xf] %vm2156, %v2087
      %2217 = vst.msk [vmem:[%s224 + $0xf0] sm:$0xf] %vm2156, %v2088
      %2218 = vst.msk [vmem:[%s224 + $0xf4] sm:$0xf] %vm2156, %v2089
      %2219 = vst.msk [vmem:[%s224 + $0xf8] sm:$0xf] %vm2156, %v2090
      %2220 = vst.msk [vmem:[%s224 + $0xfc] sm:$0xf] %vm2156, %v2091
      %s2221 = smul.u32 64, %s19
      %p2222 = scmp.lt.s32.totalorder %s20, 3
      %s2223 = scalar_select %p2222, %s20, 3
      %p2224 = scmp.lt.s32.totalorder %s2221, 63
      %s2225 = scalar_select %p2224, %s2221, 63
      %s2226 = smul.addr %s2223, 64
      %s2227 = sadd.s32 %s2225, %s2226
      %s2228 = smul.addr %s2227, 4
      %s2229 = scalar_lea.vmem %s4, %s2228
      // Predicated region
      $region41: #{tpu_custom_call.1} parent=35 // pred_check
        %p2230 = pneg %p136
      $region42: #{tpu_custom_call.1} parent=35 // pred_check_branch
        %2232 = sbr.rel (%p2230) target = $region44
      $region43: #{tpu_custom_call.1} parent=35 // pred_region
        %s2233 = smul.u32 64, %s19
      $region44: #{tpu_custom_call.1} parent=35 // pred_fallthru
        _
    $region36: #{tpu_custom_call.1} parent=5 // pred_fallthru
      _
    %p2234 = scmp.le.s32.totalorder 2, %s10
    // Predicated region
    $region45: #{tpu_custom_call.1} parent=5 // pred_check
      %p2235 = pneg %p2234
    $region46: #{tpu_custom_call.1} parent=5 // pred_check_branch
      %2237 = sbr.rel (%p2235) target = $region48
    $region47: #{tpu_custom_call.1} parent=5 // pred_region
      %s2238 = ssub.s32 %s10, 2
      // Predicated region
      $region49: #{tpu_custom_call.1} parent=47 // pred_check
        %p2239 = pneg %p142
      $region50: #{tpu_custom_call.1} parent=47 // pred_check_branch
        %2241 = sbr.rel (%p2239) target = $region52
      $region51: #{tpu_custom_call.1} parent=47 // pred_region
        %s2242 = smul.u32 64, %s21
        %p2243 = scmp.lt.s32.totalorder %s22, 3
        %s2244 = scalar_select %p2243, %s22, 3
        %p2245 = scmp.lt.s32.totalorder %s2242, 63
        %s2246 = scalar_select %p2245, %s2242, 63
        %s2247 = smul.addr %s2244, 64
        %s2248 = sadd.s32 %s2246, %s2247
        %s2249 = smul.addr %s2248, 4
        %s2250 = scalar_lea.vmem %s4, %s2249
      $region52: #{tpu_custom_call.1} parent=47 // pred_fallthru
        _
    $region48: #{tpu_custom_call.1} parent=5 // pred_fallthru
      _
  $region6: #{tpu_custom_call.1} parent=0 // loop_footer
    %s14 = sadd.s32 1, %s10
  $region7: #{tpu_custom_call.1} parent=0 // loop_footer_branch
    %9 = sbr.rel target = $region3
  $region8: #{tpu_custom_call.1} parent=0 // loop_exit
    _

</llo_original>
